<compile_context>
chip_gen: v5e
topology: v5e:2x2
jax: 0.10.0
libtpu: 0.0.40
codegen_flags: <defaults>
</compile_context>

<pallas_src>
import functools
import math

import jax
import jax.numpy as jnp
import numpy as np
from jax import lax
from jax.experimental import pallas as pl
from jax.experimental.pallas import tpu as pltpu


# ---------------------------------------------------------------------------
# Pallas kernel: full Refinement stage for one batch element
# ---------------------------------------------------------------------------
def _refinement_kernel(x_ref, w_in_ref, b_in_ref, w_dil_ref, b_dil_ref,
                       w_pw_ref, b_pw_ref, w_out_ref, b_out_ref, out_ref,
                       *, num_layers, true_len):
    x = x_ref[0]                                       # (dim, Lp)
    C = w_in_ref.shape[0]
    Lp = x.shape[1]                                    # padded (lane-dense) length
    need_pad_mask = true_len < Lp

    pos = lax.broadcasted_iota(jnp.int32, (C, Lp), 1)  # lane (time) index, hoisted
    valid = pos < true_len                             # static: only used if padded

    # input 1x1 conv (dim -> C)
    h = jnp.dot(w_in_ref[...], x, preferred_element_type=jnp.float32) + b_in_ref[...]
    if need_pad_mask:
        h = jnp.where(valid, h, 0.0)                   # keep conv zero-padding exact

    for i in range(num_layers):                        # static unroll
        d = 2 ** i

        # fused 3-tap dilated conv: (3C, C) @ (C, Lp) -> (3C, Lp), one MXU op.
        taps = jnp.dot(w_dil_ref[i], h, preferred_element_type=jnp.float32)
        center = taps[C:2 * C]                         # W[:, :, 1] @ h[t]

        s = d % Lp
        left = taps[0:C]                               # W[:, :, 0] needs h[t - d]
        if s:
            left = pltpu.roll(left, shift=s, axis=1)
        left = jnp.where(pos >= d, left, 0.0)

        right = taps[2 * C:3 * C]                      # W[:, :, 2] needs h[t + d]
        if s:
            right = pltpu.roll(right, shift=Lp - s, axis=1)
        right = jnp.where(pos < Lp - d, right, 0.0)

        y = jnp.maximum(left + center + right + b_dil_ref[i], 0.0)   # relu
        y = jnp.dot(w_pw_ref[i], y, preferred_element_type=jnp.float32) + b_pw_ref[i]
        # dropout: identity (eval mode)
        h = h + y                                      # residual
        if need_pad_mask:
            h = jnp.where(valid, h, 0.0)               # padded cols stay exactly 0

    out_ref[0] = (jnp.dot(w_out_ref[...], h, preferred_element_type=jnp.float32)
                  + b_out_ref[...])


# ---------------------------------------------------------------------------
# Python wrapper
# ---------------------------------------------------------------------------
def refinement_forward(x, params, current_layer=0, total_layers=1):
    """x: (B, dim, L) f32 (any L). Returns (B, num_classes, L)."""
    del current_layer, total_layers   # attention=False: both branches = conv_out(out)
    x = x.astype(jnp.float32)
    B, dim, L = x.shape
    num_layers, C, _, _ = params["w_dil"].shape
    num_classes = params["w_out"].shape[0]

    # Pad L up to a multiple of 128 so every tile is lane-dense (unmasked vst).
    Lp = ((L + 127) // 128) * 128
    if Lp != L:
        x = jnp.pad(x, ((0, 0), (0, 0), (0, Lp - L)))

    # Stack the 3 dilated-conv taps per layer into one (3C, C) matmul operand.
    # Row blocks: [tap0 (t-d); tap1 (t); tap2 (t+d)], rows = Cout, cols = Cin.
    w_dil = jnp.transpose(params["w_dil"], (0, 3, 1, 2)).reshape(num_layers, 3 * C, C)

    kernel = functools.partial(_refinement_kernel,
                               num_layers=num_layers, true_len=L)

    out = pl.pallas_call(
        kernel,
        out_shape=jax.ShapeDtypeStruct((B, num_classes, Lp), jnp.float32),
        grid=(B,),
        in_specs=[
            pl.BlockSpec((1, dim, Lp), lambda b: (b, 0, 0)),              # x
            pl.BlockSpec((C, dim), lambda b: (0, 0)),                     # w_in
            pl.BlockSpec((C, 1), lambda b: (0, 0)),                       # b_in
            pl.BlockSpec((num_layers, 3 * C, C), lambda b: (0, 0, 0)),    # w_dil (stacked)
            pl.BlockSpec((num_layers, C, 1), lambda b: (0, 0, 0)),        # b_dil
            pl.BlockSpec((num_layers, C, C), lambda b: (0, 0, 0)),        # w_pw
            pl.BlockSpec((num_layers, C, 1), lambda b: (0, 0, 0)),        # b_pw
            pl.BlockSpec((num_classes, C), lambda b: (0, 0)),             # w_out
            pl.BlockSpec((num_classes, 1), lambda b: (0, 0)),             # b_out
        ],
        out_specs=pl.BlockSpec((1, num_classes, Lp), lambda b: (b, 0, 0)),
        compiler_params=pltpu.CompilerParams(
            dimension_semantics=("parallel",)),
    )(x, params["w_in"], params["b_in"], w_dil, params["b_dil"],
      params["w_pw"], params["b_pw"], params["w_out"], params["b_out"])

    return out[:, :, :L] if Lp != L else out


# ---------------------------------------------------------------------------
# Pure-JAX reference (independent math: lax.conv_general_dilated)
# ---------------------------------------------------------------------------
def reference(x, params):
    hp = jax.lax.Precision.HIGHEST
    num_layers = params["w_dil"].shape[0]
    h = jnp.einsum("oi,bil->bol", params["w_in"], x, precision=hp) + params["b_in"][None]
    for i in range(num_layers):
        d = 2 ** i
        y = lax.conv_general_dilated(
            h, params["w_dil"][i], window_strides=(1,), padding=[(d, d)],
            rhs_dilation=(d,), dimension_numbers=("NCH", "OIH", "NCH"),
            precision=hp)
        y = y + params["b_dil"][i][None]
        y = jnp.maximum(y, 0.0)
        y = jnp.einsum("oi,bil->bol", params["w_pw"][i], y, precision=hp) \
            + params["b_pw"][i][None]
        h = h + y
    return jnp.einsum("oi,bil->bol", params["w_out"], h, precision=hp) \
        + params["b_out"][None]


# ---------------------------------------------------------------------------
def make_params(key, dim, num_f_maps, num_classes, num_layers):
    C = num_f_maps
    ks = jax.random.split(key, 8)

    def u(k, shape, fan_in):
        bound = 1.0 / math.sqrt(fan_in)
        return jax.random.uniform(k, shape, jnp.float32, -bound, bound)

    return {
        "w_in": u(ks[0], (C, dim), dim),
        "b_in": u(ks[1], (C, 1), dim),
        "w_dil": u(ks[2], (num_layers, C, C, 3), 3 * C),   # PyTorch (Cout, Cin, K) layout
        "b_dil": u(ks[3], (num_layers, C, 1), 3 * C),
        "w_pw": u(ks[4], (num_layers, C, C), C),
        "b_pw": u(ks[5], (num_layers, C, 1), C),
        "w_out": u(ks[6], (num_classes, C), C),
        "b_out": u(ks[7], (num_classes, 1), C),
    }


if __name__ == "__main__":
    # small, module-consistent shapes; L deliberately NOT a multiple of 128 to
    # exercise the lane-dense padding + masking path.
    B, L = 2, 200
    dim, num_f_maps, num_classes, num_layers = 16, 32, 16, 4

    key = jax.random.PRNGKey(0)
    k_x, k_p = jax.random.split(key)
    x = jax.random.normal(k_x, (B, dim, L), jnp.float32)
    params = make_params(k_p, dim, num_f_maps, num_classes, num_layers)

    out = refinement_forward(x, params, current_layer=3, total_layers=4)
    out = jax.block_until_ready(out)

    ref = reference(x, params)
    np.testing.assert_allclose(np.asarray(out), np.asarray(ref),
                               rtol=1e-2, atol=1e-2)
    print("KERNEL_OK")
</pallas_src>

<mosaic_0001>
module attributes {stable_mosaic.version = 11 : i64} {
  func.func @_refinement_kernel(%arg0: i32, %arg1: memref<1x16x256xf32, #tpu.memory_space<vmem>>, %arg2: memref<32x16xf32, #tpu.memory_space<vmem>>, %arg3: memref<32x1xf32, #tpu.memory_space<vmem>>, %arg4: memref<4x96x32xf32, #tpu.memory_space<vmem>>, %arg5: memref<4x32x1xf32, #tpu.memory_space<vmem>>, %arg6: memref<4x32x32xf32, #tpu.memory_space<vmem>>, %arg7: memref<4x32x1xf32, #tpu.memory_space<vmem>>, %arg8: memref<16x32xf32, #tpu.memory_space<vmem>>, %arg9: memref<16x1xf32, #tpu.memory_space<vmem>>, %arg10: memref<1x16x256xf32, #tpu.memory_space<vmem>>) attributes {dimension_semantics = [#tpu.dimension_semantics<parallel>], iteration_bounds = array<i64: 2>, scalar_prefetch = 0 : i64, scratch_operands = 0 : i64, tpu.core_type = #tpu.core_type<tc>, window_params = [{transform_indices = @transform_0, window_bounds = array<i64: 1, 16, 256>}, {pipeline_mode = #tpu.pipeline_mode<synchronous>, transform_indices = @transform_1, window_bounds = array<i64: 32, 16>}, {pipeline_mode = #tpu.pipeline_mode<synchronous>, transform_indices = @transform_2, window_bounds = array<i64: 32, 1>}, {pipeline_mode = #tpu.pipeline_mode<synchronous>, transform_indices = @transform_3, window_bounds = array<i64: 4, 96, 32>}, {pipeline_mode = #tpu.pipeline_mode<synchronous>, transform_indices = @transform_4, window_bounds = array<i64: 4, 32, 1>}, {pipeline_mode = #tpu.pipeline_mode<synchronous>, transform_indices = @transform_5, window_bounds = array<i64: 4, 32, 32>}, {pipeline_mode = #tpu.pipeline_mode<synchronous>, transform_indices = @transform_6, window_bounds = array<i64: 4, 32, 1>}, {pipeline_mode = #tpu.pipeline_mode<synchronous>, transform_indices = @transform_7, window_bounds = array<i64: 16, 32>}, {pipeline_mode = #tpu.pipeline_mode<synchronous>, transform_indices = @transform_8, window_bounds = array<i64: 16, 1>}, {transform_indices = @transform_9, window_bounds = array<i64: 1, 16, 256>}]} {
    %c0 = arith.constant 0 : index
    %c0_0 = arith.constant 0 : index
    %c0_1 = arith.constant 0 : index
    %0 = vector.load %arg1[%c0, %c0_0, %c0_1] : memref<1x16x256xf32, #tpu.memory_space<vmem>>, vector<1x16x256xf32>
    %1 = vector.shape_cast %0 : vector<1x16x256xf32> to vector<16x256xf32>
    %2 = tpu.iota {dimensions = array<i32: 1>} : vector<32x256xi32>
    %c200_i32 = arith.constant 200 : i32
    %3 = vector.broadcast %c200_i32 : i32 to vector<32x256xi32>
    %4 = arith.cmpi slt, %2, %3 : vector<32x256xi32>
    %c0_2 = arith.constant 0 : index
    %c0_3 = arith.constant 0 : index
    %5 = vector.load %arg2[%c0_2, %c0_3] : memref<32x16xf32, #tpu.memory_space<vmem>>, vector<32x16xf32>
    %cst = arith.constant dense<0.000000e+00> : vector<32x256xf32>
    %6 = tpu.matmul %5, %1, %cst {dimension_numbers = #tpu.dot_dimension_numbers<[1], [0], [0], [1], [0, 0, 1, 1], [], []>} : vector<32x16xf32>, vector<16x256xf32>, vector<32x256xf32> -> vector<32x256xf32>
    %c0_4 = arith.constant 0 : index
    %c0_5 = arith.constant 0 : index
    %7 = vector.load %arg3[%c0_4, %c0_5] : memref<32x1xf32, #tpu.memory_space<vmem>>, vector<32x1xf32>
    %8 = vector.broadcast %7 : vector<32x1xf32> to vector<32x256xf32>
    %9 = arith.addf %6, %8 : vector<32x256xf32>
    %cst_6 = arith.constant 0.000000e+00 : f32
    %10 = vector.broadcast %cst_6 : f32 to vector<32x256xf32>
    %11 = arith.select %4, %9, %10 : vector<32x256xi1>, vector<32x256xf32>
    %c0_7 = arith.constant 0 : index
    %c0_8 = arith.constant 0 : index
    %c0_9 = arith.constant 0 : index
    %12 = vector.load %arg4[%c0_7, %c0_8, %c0_9] : memref<4x96x32xf32, #tpu.memory_space<vmem>>, vector<1x96x32xf32>
    %13 = vector.shape_cast %12 : vector<1x96x32xf32> to vector<96x32xf32>
    %cst_10 = arith.constant dense<0.000000e+00> : vector<96x256xf32>
    %14 = tpu.matmul %13, %11, %cst_10 {dimension_numbers = #tpu.dot_dimension_numbers<[1], [0], [0], [1], [0, 0, 1, 1], [], []>} : vector<96x32xf32>, vector<32x256xf32>, vector<96x256xf32> -> vector<96x256xf32>
    %15 = vector.extract_strided_slice %14 {offsets = [32, 0], sizes = [32, 256], strides = [1, 1]} : vector<96x256xf32> to vector<32x256xf32>
    %16 = vector.extract_strided_slice %14 {offsets = [0, 0], sizes = [32, 256], strides = [1, 1]} : vector<96x256xf32> to vector<32x256xf32>
    %c1_i32 = arith.constant 1 : i32
    %17 = tpu.dynamic_rotate %16 by %c1_i32 dim 1 : vector<32x256xf32>, i32 -> vector<32x256xf32>
    %c1_i32_11 = arith.constant 1 : i32
    %18 = vector.broadcast %c1_i32_11 : i32 to vector<32x256xi32>
    %19 = arith.cmpi sge, %2, %18 : vector<32x256xi32>
    %cst_12 = arith.constant 0.000000e+00 : f32
    %20 = vector.broadcast %cst_12 : f32 to vector<32x256xf32>
    %21 = arith.select %19, %17, %20 : vector<32x256xi1>, vector<32x256xf32>
    %22 = vector.extract_strided_slice %14 {offsets = [64, 0], sizes = [32, 256], strides = [1, 1]} : vector<96x256xf32> to vector<32x256xf32>
    %c255_i32 = arith.constant 255 : i32
    %23 = tpu.dynamic_rotate %22 by %c255_i32 dim 1 : vector<32x256xf32>, i32 -> vector<32x256xf32>
    %c255_i32_13 = arith.constant 255 : i32
    %24 = vector.broadcast %c255_i32_13 : i32 to vector<32x256xi32>
    %25 = arith.cmpi slt, %2, %24 : vector<32x256xi32>
    %cst_14 = arith.constant 0.000000e+00 : f32
    %26 = vector.broadcast %cst_14 : f32 to vector<32x256xf32>
    %27 = arith.select %25, %23, %26 : vector<32x256xi1>, vector<32x256xf32>
    %28 = arith.addf %21, %15 : vector<32x256xf32>
    %29 = arith.addf %28, %27 : vector<32x256xf32>
    %c0_15 = arith.constant 0 : index
    %c0_16 = arith.constant 0 : index
    %c0_17 = arith.constant 0 : index
    %30 = vector.load %arg5[%c0_15, %c0_16, %c0_17] : memref<4x32x1xf32, #tpu.memory_space<vmem>>, vector<1x32x1xf32>
    %31 = vector.shape_cast %30 : vector<1x32x1xf32> to vector<32x1xf32>
    %32 = vector.broadcast %31 : vector<32x1xf32> to vector<32x256xf32>
    %33 = arith.addf %29, %32 : vector<32x256xf32>
    %cst_18 = arith.constant 0.000000e+00 : f32
    %34 = vector.broadcast %cst_18 : f32 to vector<32x256xf32>
    %35 = arith.maximumf %33, %34 : vector<32x256xf32>
    %c0_19 = arith.constant 0 : index
    %c0_20 = arith.constant 0 : index
    %c0_21 = arith.constant 0 : index
    %36 = vector.load %arg6[%c0_19, %c0_20, %c0_21] : memref<4x32x32xf32, #tpu.memory_space<vmem>>, vector<1x32x32xf32>
    %37 = vector.shape_cast %36 : vector<1x32x32xf32> to vector<32x32xf32>
    %cst_22 = arith.constant dense<0.000000e+00> : vector<32x256xf32>
    %38 = tpu.matmul %37, %35, %cst_22 {dimension_numbers = #tpu.dot_dimension_numbers<[1], [0], [0], [1], [0, 0, 1, 1], [], []>} : vector<32x32xf32>, vector<32x256xf32>, vector<32x256xf32> -> vector<32x256xf32>
    %c0_23 = arith.constant 0 : index
    %c0_24 = arith.constant 0 : index
    %c0_25 = arith.constant 0 : index
    %39 = vector.load %arg7[%c0_23, %c0_24, %c0_25] : memref<4x32x1xf32, #tpu.memory_space<vmem>>, vector<1x32x1xf32>
    %40 = vector.shape_cast %39 : vector<1x32x1xf32> to vector<32x1xf32>
    %41 = vector.broadcast %40 : vector<32x1xf32> to vector<32x256xf32>
    %42 = arith.addf %38, %41 : vector<32x256xf32>
    %43 = arith.addf %11, %42 : vector<32x256xf32>
    %cst_26 = arith.constant 0.000000e+00 : f32
    %44 = vector.broadcast %cst_26 : f32 to vector<32x256xf32>
    %45 = arith.select %4, %43, %44 : vector<32x256xi1>, vector<32x256xf32>
    %c1 = arith.constant 1 : index
    %c0_27 = arith.constant 0 : index
    %c0_28 = arith.constant 0 : index
    %46 = vector.load %arg4[%c1, %c0_27, %c0_28] : memref<4x96x32xf32, #tpu.memory_space<vmem>>, vector<1x96x32xf32>
    %47 = vector.shape_cast %46 : vector<1x96x32xf32> to vector<96x32xf32>
    %cst_29 = arith.constant dense<0.000000e+00> : vector<96x256xf32>
    %48 = tpu.matmul %47, %45, %cst_29 {dimension_numbers = #tpu.dot_dimension_numbers<[1], [0], [0], [1], [0, 0, 1, 1], [], []>} : vector<96x32xf32>, vector<32x256xf32>, vector<96x256xf32> -> vector<96x256xf32>
    %49 = vector.extract_strided_slice %48 {offsets = [32, 0], sizes = [32, 256], strides = [1, 1]} : vector<96x256xf32> to vector<32x256xf32>
    %50 = vector.extract_strided_slice %48 {offsets = [0, 0], sizes = [32, 256], strides = [1, 1]} : vector<96x256xf32> to vector<32x256xf32>
    %c2_i32 = arith.constant 2 : i32
    %51 = tpu.dynamic_rotate %50 by %c2_i32 dim 1 : vector<32x256xf32>, i32 -> vector<32x256xf32>
    %c2_i32_30 = arith.constant 2 : i32
    %52 = vector.broadcast %c2_i32_30 : i32 to vector<32x256xi32>
    %53 = arith.cmpi sge, %2, %52 : vector<32x256xi32>
    %cst_31 = arith.constant 0.000000e+00 : f32
    %54 = vector.broadcast %cst_31 : f32 to vector<32x256xf32>
    %55 = arith.select %53, %51, %54 : vector<32x256xi1>, vector<32x256xf32>
    %56 = vector.extract_strided_slice %48 {offsets = [64, 0], sizes = [32, 256], strides = [1, 1]} : vector<96x256xf32> to vector<32x256xf32>
    %c254_i32 = arith.constant 254 : i32
    %57 = tpu.dynamic_rotate %56 by %c254_i32 dim 1 : vector<32x256xf32>, i32 -> vector<32x256xf32>
    %c254_i32_32 = arith.constant 254 : i32
    %58 = vector.broadcast %c254_i32_32 : i32 to vector<32x256xi32>
    %59 = arith.cmpi slt, %2, %58 : vector<32x256xi32>
    %cst_33 = arith.constant 0.000000e+00 : f32
    %60 = vector.broadcast %cst_33 : f32 to vector<32x256xf32>
    %61 = arith.select %59, %57, %60 : vector<32x256xi1>, vector<32x256xf32>
    %62 = arith.addf %55, %49 : vector<32x256xf32>
    %63 = arith.addf %62, %61 : vector<32x256xf32>
    %c1_34 = arith.constant 1 : index
    %c0_35 = arith.constant 0 : index
    %c0_36 = arith.constant 0 : index
    %64 = vector.load %arg5[%c1_34, %c0_35, %c0_36] : memref<4x32x1xf32, #tpu.memory_space<vmem>>, vector<1x32x1xf32>
    %65 = vector.shape_cast %64 : vector<1x32x1xf32> to vector<32x1xf32>
    %66 = vector.broadcast %65 : vector<32x1xf32> to vector<32x256xf32>
    %67 = arith.addf %63, %66 : vector<32x256xf32>
    %cst_37 = arith.constant 0.000000e+00 : f32
    %68 = vector.broadcast %cst_37 : f32 to vector<32x256xf32>
    %69 = arith.maximumf %67, %68 : vector<32x256xf32>
    %c1_38 = arith.constant 1 : index
    %c0_39 = arith.constant 0 : index
    %c0_40 = arith.constant 0 : index
    %70 = vector.load %arg6[%c1_38, %c0_39, %c0_40] : memref<4x32x32xf32, #tpu.memory_space<vmem>>, vector<1x32x32xf32>
    %71 = vector.shape_cast %70 : vector<1x32x32xf32> to vector<32x32xf32>
    %cst_41 = arith.constant dense<0.000000e+00> : vector<32x256xf32>
    %72 = tpu.matmul %71, %69, %cst_41 {dimension_numbers = #tpu.dot_dimension_numbers<[1], [0], [0], [1], [0, 0, 1, 1], [], []>} : vector<32x32xf32>, vector<32x256xf32>, vector<32x256xf32> -> vector<32x256xf32>
    %c1_42 = arith.constant 1 : index
    %c0_43 = arith.constant 0 : index
    %c0_44 = arith.constant 0 : index
    %73 = vector.load %arg7[%c1_42, %c0_43, %c0_44] : memref<4x32x1xf32, #tpu.memory_space<vmem>>, vector<1x32x1xf32>
    %74 = vector.shape_cast %73 : vector<1x32x1xf32> to vector<32x1xf32>
    %75 = vector.broadcast %74 : vector<32x1xf32> to vector<32x256xf32>
    %76 = arith.addf %72, %75 : vector<32x256xf32>
    %77 = arith.addf %45, %76 : vector<32x256xf32>
    %cst_45 = arith.constant 0.000000e+00 : f32
    %78 = vector.broadcast %cst_45 : f32 to vector<32x256xf32>
    %79 = arith.select %4, %77, %78 : vector<32x256xi1>, vector<32x256xf32>
    %c2 = arith.constant 2 : index
    %c0_46 = arith.constant 0 : index
    %c0_47 = arith.constant 0 : index
    %80 = vector.load %arg4[%c2, %c0_46, %c0_47] : memref<4x96x32xf32, #tpu.memory_space<vmem>>, vector<1x96x32xf32>
    %81 = vector.shape_cast %80 : vector<1x96x32xf32> to vector<96x32xf32>
    %cst_48 = arith.constant dense<0.000000e+00> : vector<96x256xf32>
    %82 = tpu.matmul %81, %79, %cst_48 {dimension_numbers = #tpu.dot_dimension_numbers<[1], [0], [0], [1], [0, 0, 1, 1], [], []>} : vector<96x32xf32>, vector<32x256xf32>, vector<96x256xf32> -> vector<96x256xf32>
    %83 = vector.extract_strided_slice %82 {offsets = [32, 0], sizes = [32, 256], strides = [1, 1]} : vector<96x256xf32> to vector<32x256xf32>
    %84 = vector.extract_strided_slice %82 {offsets = [0, 0], sizes = [32, 256], strides = [1, 1]} : vector<96x256xf32> to vector<32x256xf32>
    %c4_i32 = arith.constant 4 : i32
    %85 = tpu.dynamic_rotate %84 by %c4_i32 dim 1 : vector<32x256xf32>, i32 -> vector<32x256xf32>
    %c4_i32_49 = arith.constant 4 : i32
    %86 = vector.broadcast %c4_i32_49 : i32 to vector<32x256xi32>
    %87 = arith.cmpi sge, %2, %86 : vector<32x256xi32>
    %cst_50 = arith.constant 0.000000e+00 : f32
    %88 = vector.broadcast %cst_50 : f32 to vector<32x256xf32>
    %89 = arith.select %87, %85, %88 : vector<32x256xi1>, vector<32x256xf32>
    %90 = vector.extract_strided_slice %82 {offsets = [64, 0], sizes = [32, 256], strides = [1, 1]} : vector<96x256xf32> to vector<32x256xf32>
    %c252_i32 = arith.constant 252 : i32
    %91 = tpu.dynamic_rotate %90 by %c252_i32 dim 1 : vector<32x256xf32>, i32 -> vector<32x256xf32>
    %c252_i32_51 = arith.constant 252 : i32
    %92 = vector.broadcast %c252_i32_51 : i32 to vector<32x256xi32>
    %93 = arith.cmpi slt, %2, %92 : vector<32x256xi32>
    %cst_52 = arith.constant 0.000000e+00 : f32
    %94 = vector.broadcast %cst_52 : f32 to vector<32x256xf32>
    %95 = arith.select %93, %91, %94 : vector<32x256xi1>, vector<32x256xf32>
    %96 = arith.addf %89, %83 : vector<32x256xf32>
    %97 = arith.addf %96, %95 : vector<32x256xf32>
    %c2_53 = arith.constant 2 : index
    %c0_54 = arith.constant 0 : index
    %c0_55 = arith.constant 0 : index
    %98 = vector.load %arg5[%c2_53, %c0_54, %c0_55] : memref<4x32x1xf32, #tpu.memory_space<vmem>>, vector<1x32x1xf32>
    %99 = vector.shape_cast %98 : vector<1x32x1xf32> to vector<32x1xf32>
    %100 = vector.broadcast %99 : vector<32x1xf32> to vector<32x256xf32>
    %101 = arith.addf %97, %100 : vector<32x256xf32>
    %cst_56 = arith.constant 0.000000e+00 : f32
    %102 = vector.broadcast %cst_56 : f32 to vector<32x256xf32>
    %103 = arith.maximumf %101, %102 : vector<32x256xf32>
    %c2_57 = arith.constant 2 : index
    %c0_58 = arith.constant 0 : index
    %c0_59 = arith.constant 0 : index
    %104 = vector.load %arg6[%c2_57, %c0_58, %c0_59] : memref<4x32x32xf32, #tpu.memory_space<vmem>>, vector<1x32x32xf32>
    %105 = vector.shape_cast %104 : vector<1x32x32xf32> to vector<32x32xf32>
    %cst_60 = arith.constant dense<0.000000e+00> : vector<32x256xf32>
    %106 = tpu.matmul %105, %103, %cst_60 {dimension_numbers = #tpu.dot_dimension_numbers<[1], [0], [0], [1], [0, 0, 1, 1], [], []>} : vector<32x32xf32>, vector<32x256xf32>, vector<32x256xf32> -> vector<32x256xf32>
    %c2_61 = arith.constant 2 : index
    %c0_62 = arith.constant 0 : index
    %c0_63 = arith.constant 0 : index
    %107 = vector.load %arg7[%c2_61, %c0_62, %c0_63] : memref<4x32x1xf32, #tpu.memory_space<vmem>>, vector<1x32x1xf32>
    %108 = vector.shape_cast %107 : vector<1x32x1xf32> to vector<32x1xf32>
    %109 = vector.broadcast %108 : vector<32x1xf32> to vector<32x256xf32>
    %110 = arith.addf %106, %109 : vector<32x256xf32>
    %111 = arith.addf %79, %110 : vector<32x256xf32>
    %cst_64 = arith.constant 0.000000e+00 : f32
    %112 = vector.broadcast %cst_64 : f32 to vector<32x256xf32>
    %113 = arith.select %4, %111, %112 : vector<32x256xi1>, vector<32x256xf32>
    %c3 = arith.constant 3 : index
    %c0_65 = arith.constant 0 : index
    %c0_66 = arith.constant 0 : index
    %114 = vector.load %arg4[%c3, %c0_65, %c0_66] : memref<4x96x32xf32, #tpu.memory_space<vmem>>, vector<1x96x32xf32>
    %115 = vector.shape_cast %114 : vector<1x96x32xf32> to vector<96x32xf32>
    %cst_67 = arith.constant dense<0.000000e+00> : vector<96x256xf32>
    %116 = tpu.matmul %115, %113, %cst_67 {dimension_numbers = #tpu.dot_dimension_numbers<[1], [0], [0], [1], [0, 0, 1, 1], [], []>} : vector<96x32xf32>, vector<32x256xf32>, vector<96x256xf32> -> vector<96x256xf32>
    %117 = vector.extract_strided_slice %116 {offsets = [32, 0], sizes = [32, 256], strides = [1, 1]} : vector<96x256xf32> to vector<32x256xf32>
    %118 = vector.extract_strided_slice %116 {offsets = [0, 0], sizes = [32, 256], strides = [1, 1]} : vector<96x256xf32> to vector<32x256xf32>
    %c8_i32 = arith.constant 8 : i32
    %119 = tpu.dynamic_rotate %118 by %c8_i32 dim 1 : vector<32x256xf32>, i32 -> vector<32x256xf32>
    %c8_i32_68 = arith.constant 8 : i32
    %120 = vector.broadcast %c8_i32_68 : i32 to vector<32x256xi32>
    %121 = arith.cmpi sge, %2, %120 : vector<32x256xi32>
    %cst_69 = arith.constant 0.000000e+00 : f32
    %122 = vector.broadcast %cst_69 : f32 to vector<32x256xf32>
    %123 = arith.select %121, %119, %122 : vector<32x256xi1>, vector<32x256xf32>
    %124 = vector.extract_strided_slice %116 {offsets = [64, 0], sizes = [32, 256], strides = [1, 1]} : vector<96x256xf32> to vector<32x256xf32>
    %c248_i32 = arith.constant 248 : i32
    %125 = tpu.dynamic_rotate %124 by %c248_i32 dim 1 : vector<32x256xf32>, i32 -> vector<32x256xf32>
    %c248_i32_70 = arith.constant 248 : i32
    %126 = vector.broadcast %c248_i32_70 : i32 to vector<32x256xi32>
    %127 = arith.cmpi slt, %2, %126 : vector<32x256xi32>
    %cst_71 = arith.constant 0.000000e+00 : f32
    %128 = vector.broadcast %cst_71 : f32 to vector<32x256xf32>
    %129 = arith.select %127, %125, %128 : vector<32x256xi1>, vector<32x256xf32>
    %130 = arith.addf %123, %117 : vector<32x256xf32>
    %131 = arith.addf %130, %129 : vector<32x256xf32>
    %c3_72 = arith.constant 3 : index
    %c0_73 = arith.constant 0 : index
    %c0_74 = arith.constant 0 : index
    %132 = vector.load %arg5[%c3_72, %c0_73, %c0_74] : memref<4x32x1xf32, #tpu.memory_space<vmem>>, vector<1x32x1xf32>
    %133 = vector.shape_cast %132 : vector<1x32x1xf32> to vector<32x1xf32>
    %134 = vector.broadcast %133 : vector<32x1xf32> to vector<32x256xf32>
    %135 = arith.addf %131, %134 : vector<32x256xf32>
    %cst_75 = arith.constant 0.000000e+00 : f32
    %136 = vector.broadcast %cst_75 : f32 to vector<32x256xf32>
    %137 = arith.maximumf %135, %136 : vector<32x256xf32>
    %c3_76 = arith.constant 3 : index
    %c0_77 = arith.constant 0 : index
    %c0_78 = arith.constant 0 : index
    %138 = vector.load %arg6[%c3_76, %c0_77, %c0_78] : memref<4x32x32xf32, #tpu.memory_space<vmem>>, vector<1x32x32xf32>
    %139 = vector.shape_cast %138 : vector<1x32x32xf32> to vector<32x32xf32>
    %cst_79 = arith.constant dense<0.000000e+00> : vector<32x256xf32>
    %140 = tpu.matmul %139, %137, %cst_79 {dimension_numbers = #tpu.dot_dimension_numbers<[1], [0], [0], [1], [0, 0, 1, 1], [], []>} : vector<32x32xf32>, vector<32x256xf32>, vector<32x256xf32> -> vector<32x256xf32>
    %c3_80 = arith.constant 3 : index
    %c0_81 = arith.constant 0 : index
    %c0_82 = arith.constant 0 : index
    %141 = vector.load %arg7[%c3_80, %c0_81, %c0_82] : memref<4x32x1xf32, #tpu.memory_space<vmem>>, vector<1x32x1xf32>
    %142 = vector.shape_cast %141 : vector<1x32x1xf32> to vector<32x1xf32>
    %143 = vector.broadcast %142 : vector<32x1xf32> to vector<32x256xf32>
    %144 = arith.addf %140, %143 : vector<32x256xf32>
    %145 = arith.addf %113, %144 : vector<32x256xf32>
    %cst_83 = arith.constant 0.000000e+00 : f32
    %146 = vector.broadcast %cst_83 : f32 to vector<32x256xf32>
    %147 = arith.select %4, %145, %146 : vector<32x256xi1>, vector<32x256xf32>
    %c0_84 = arith.constant 0 : index
    %c0_85 = arith.constant 0 : index
    %148 = vector.load %arg8[%c0_84, %c0_85] : memref<16x32xf32, #tpu.memory_space<vmem>>, vector<16x32xf32>
    %cst_86 = arith.constant dense<0.000000e+00> : vector<16x256xf32>
    %149 = tpu.matmul %148, %147, %cst_86 {dimension_numbers = #tpu.dot_dimension_numbers<[1], [0], [0], [1], [0, 0, 1, 1], [], []>} : vector<16x32xf32>, vector<32x256xf32>, vector<16x256xf32> -> vector<16x256xf32>
    %c0_87 = arith.constant 0 : index
    %c0_88 = arith.constant 0 : index
    %150 = vector.load %arg9[%c0_87, %c0_88] : memref<16x1xf32, #tpu.memory_space<vmem>>, vector<16x1xf32>
    %151 = vector.broadcast %150 : vector<16x1xf32> to vector<16x256xf32>
    %152 = arith.addf %149, %151 : vector<16x256xf32>
    %c0_89 = arith.constant 0 : index
    %c0_90 = arith.constant 0 : index
    %c0_91 = arith.constant 0 : index
    %153 = vector.load %arg10[%c0_89, %c0_90, %c0_91] : memref<1x16x256xf32, #tpu.memory_space<vmem>>, vector<1x16x256xf32>
    %154 = vector.shape_cast %153 : vector<1x16x256xf32> to vector<16x256xf32>
    %155 = vector.shape_cast %152 : vector<16x256xf32> to vector<1x16x256xf32>
    tpu.vector_store %arg10[%c0_89, %c0_90, %c0_91], %155 {strides = array<i32>} : memref<1x16x256xf32, #tpu.memory_space<vmem>>, vector<1x16x256xf32>,
    return
  }
  func.func @transform_0(%arg0: i32) -> (i32, i32, i32) {
    %c0_i32 = arith.constant 0 : i32
    %c0_i32_0 = arith.constant 0 : i32
    %c0_i32_1 = arith.constant 0 : i32
    return %arg0, %c0_i32, %c0_i32_0 : i32, i32, i32
  }
  func.func @transform_1(%arg0: i32) -> (i32, i32) {
    %c0_i32 = arith.constant 0 : i32
    %c0_i32_0 = arith.constant 0 : i32
    %c0_i32_1 = arith.constant 0 : i32
    return %c0_i32, %c0_i32_0 : i32, i32
  }
  func.func @transform_2(%arg0: i32) -> (i32, i32) {
    %c0_i32 = arith.constant 0 : i32
    %c0_i32_0 = arith.constant 0 : i32
    %c0_i32_1 = arith.constant 0 : i32
    return %c0_i32, %c0_i32_0 : i32, i32
  }
  func.func @transform_3(%arg0: i32) -> (i32, i32, i32) {
    %c0_i32 = arith.constant 0 : i32
    %c0_i32_0 = arith.constant 0 : i32
    %c0_i32_1 = arith.constant 0 : i32
    %c0_i32_2 = arith.constant 0 : i32
    return %c0_i32, %c0_i32_0, %c0_i32_1 : i32, i32, i32
  }
  func.func @transform_4(%arg0: i32) -> (i32, i32, i32) {
    %c0_i32 = arith.constant 0 : i32
    %c0_i32_0 = arith.constant 0 : i32
    %c0_i32_1 = arith.constant 0 : i32
    %c0_i32_2 = arith.constant 0 : i32
    return %c0_i32, %c0_i32_0, %c0_i32_1 : i32, i32, i32
  }
  func.func @transform_5(%arg0: i32) -> (i32, i32, i32) {
    %c0_i32 = arith.constant 0 : i32
    %c0_i32_0 = arith.constant 0 : i32
    %c0_i32_1 = arith.constant 0 : i32
    %c0_i32_2 = arith.constant 0 : i32
    return %c0_i32, %c0_i32_0, %c0_i32_1 : i32, i32, i32
  }
  func.func @transform_6(%arg0: i32) -> (i32, i32, i32) {
    %c0_i32 = arith.constant 0 : i32
    %c0_i32_0 = arith.constant 0 : i32
    %c0_i32_1 = arith.constant 0 : i32
    %c0_i32_2 = arith.constant 0 : i32
    return %c0_i32, %c0_i32_0, %c0_i32_1 : i32, i32, i32
  }
  func.func @transform_7(%arg0: i32) -> (i32, i32) {
    %c0_i32 = arith.constant 0 : i32
    %c0_i32_0 = arith.constant 0 : i32
    %c0_i32_1 = arith.constant 0 : i32
    return %c0_i32, %c0_i32_0 : i32, i32
  }
  func.func @transform_8(%arg0: i32) -> (i32, i32) {
    %c0_i32 = arith.constant 0 : i32
    %c0_i32_0 = arith.constant 0 : i32
    %c0_i32_1 = arith.constant 0 : i32
    return %c0_i32, %c0_i32_0 : i32, i32
  }
  func.func @transform_9(%arg0: i32) -> (i32, i32, i32) {
    %c0_i32 = arith.constant 0 : i32
    %c0_i32_0 = arith.constant 0 : i32
    %c0_i32_1 = arith.constant 0 : i32
    return %arg0, %c0_i32, %c0_i32_0 : i32, i32, i32
  }
}

</mosaic_0001>

<llo_original>
// kernel: tpu_custom_call.1
$region0: #{tpu_custom_call.1}
  #allocation0 [shape = 'u32[]', space=smem, size = 0x4, offset = 0x4, fixed_abs, tag = 'smem constant byte address 0x4 - core index']
  #allocation1 [shape = 'u32[72,128]{1,0:T(1,128)}', space=vmem, size = 0x9000, scoped, tag = 'internal scratch']
  %s0 = inlined_call_operand.vmem [shape: f32[2,16,256], index: 0, kind: input, shape index: {}]
  %s1 = inlined_call_operand.vmem [shape: f32[32,16], index: 1, kind: input, shape index: {}]
  %s2 = inlined_call_operand.vmem [shape: f32[32,1], index: 2, kind: input, shape index: {}]
  %s3 = inlined_call_operand.vmem [shape: f32[4,96,32], index: 3, kind: input, shape index: {}]
  %s4 = inlined_call_operand.vmem [shape: f32[4,32,1], index: 4, kind: input, shape index: {}]
  %s5 = inlined_call_operand.vmem [shape: f32[4,32,32], index: 5, kind: input, shape index: {}]
  %s6 = inlined_call_operand.vmem [shape: f32[4,32,1], index: 6, kind: input, shape index: {}]
  %s7 = inlined_call_operand.vmem [shape: f32[16,32], index: 7, kind: input, shape index: {}]
  %s8 = inlined_call_operand.vmem [shape: f32[16,1], index: 8, kind: input, shape index: {}]
  %s9 = inlined_call_operand.hbm [shape: f32[2,16,256], index: 9, kind: output, shape index: {}]
  %s10 = sld [smem:[#allocation0]]
  $region69: #{tpu_custom_call.1} parent=0
    _
  %s12 = ssub.s32 1, %s10
  %s13 = scalar_select 0, %s12, %s10
  $region1: #{tpu_custom_call.1} parent=0
    #allocation2 [shape = 'u8[32768]{0}', space=vmem, size = 0x8000, scoped, tag = 'output window, operand 0']
    #allocation3 [shape = 's32[2]{0}', space=sflag, size = 0x8, scoped, tag = 'scoped memory for tpu_custom_call.1']
    %14 = vsyncpa [#allocation3], 0
    %s15 = scalar_lea.sflag [#allocation3], 1
    %16 = vsyncpa %s15, 0
    loop: start=0, step=1, limit=4
    $region2: #{tpu_custom_call.1} parent=1 // loop_pre_header
      _
    $region3: #{tpu_custom_call.1} parent=1 // loop_header
      %s18 = sphi 0, %s22
      %p19 = scmp.ge.s32.totalorder %s18, 4
      %s28 = sphi 0, %s30
      %s31 = sphi 0, %s28
      %s32 = sphi 0, %s31
      %s48 = sphi 0, %s32
      %s52 = sphi 0, %s52
      %s54 = sphi 0, %s52
      %s55 = sphi 0, %s54
      %s69 = sphi 0, %s55
      %s73 = sphi 0, %s73
      %s75 = sphi 0, %s73
      %s76 = sphi 0, %s75
      %s90 = sphi 0, %s76
      %s94 = sphi 0, %s94
      %s96 = sphi 0, %s94
      %s97 = sphi 0, %s96
      %s111 = sphi 0, %s97
      %s115 = sphi 0, %s115
      %s117 = sphi 0, %s115
      %s118 = sphi 0, %s117
      %s132 = sphi 0, %s118
      %s136 = sphi 0, %s136
      %s138 = sphi 0, %s136
      %s139 = sphi 0, %s138
      %s153 = sphi 0, %s139
      %s157 = sphi 0, %s157
      %s159 = sphi 0, %s157
      %s160 = sphi 0, %s159
      %s174 = sphi 0, %s160
      %s178 = sphi 0, %s178
      %s180 = sphi 0, %s178
      %s181 = sphi 0, %s180
      %s195 = sphi 0, %s181
      %s199 = sphi 0, %s199
      %s201 = sphi 0, %s199
      %s202 = sphi 0, %s201
      %s216 = sphi 0, %s202
      %s222 = sphi 0, %s224
      %s225 = sphi 0, %s222
      %s226 = sphi 0, %s225
      %s242 = sphi 0, %s226
    $region4: #{tpu_custom_call.1} parent=1 // loop_header_branch
      %21 = sbr.rel (%p19) target = $region8
    $region5: #{tpu_custom_call.1} parent=1 // loop_body
      %s23 = ssub.s32 %s18, 1
      %s24 = ssub.s32 %s18, 2
      %s25 = sadd.s32 %s18, 1
      %s26 = ssub.s32 %s18, %s25
      %p27 = scmp.eq.s32.totalorder %s26, 0
      %s29 = sadd.s32 %s28, 1
      %s30 = scalar_select %p27, %s28, %s29
      %p33 = pneg %p27
      %p34 = scmp.eq.s32.totalorder %s18, 1
      %p35 = por %p33, %p34
      %p36 = scmp.ne.s32.totalorder %s28, %s31
      %p37 = scmp.eq.s32.totalorder %s18, 0
      %p38 = por %p36, %p37
      %p39 = scmp.ne.s32.totalorder %s28, %s31
      %p40 = scmp.eq.s32.totalorder %s23, 1
      %p41 = por %p39, %p40
      %p42 = scmp.ne.s32.totalorder %s31, %s32
      %p43 = scmp.eq.s32.totalorder %s23, 0
      %p44 = por %p42, %p43
      %p45 = scmp.ne.s32.totalorder %s31, %s32
      %p46 = scmp.eq.s32.totalorder %s24, 1
      %p47 = por %p45, %p46
      %p49 = scmp.ne.s32.totalorder %s32, %s48
      %p50 = scmp.eq.s32.totalorder %s24, 0
      %p51 = por %p49, %p50
      %s53 = sadd.s32 %s52, 1
      %p56 = scmp.eq.s32.totalorder %s18, 1
      %p57 = scmp.ne.s32.totalorder %s52, %s54
      %p58 = scmp.eq.s32.totalorder %s18, 0
      %p59 = por %p57, %p58
      %p60 = scmp.ne.s32.totalorder %s52, %s54
      %p61 = scmp.eq.s32.totalorder %s23, 1
      %p62 = por %p60, %p61
      %p63 = scmp.ne.s32.totalorder %s54, %s55
      %p64 = scmp.eq.s32.totalorder %s23, 0
      %p65 = por %p63, %p64
      %p66 = scmp.ne.s32.totalorder %s54, %s55
      %p67 = scmp.eq.s32.totalorder %s24, 1
      %p68 = por %p66, %p67
      %p70 = scmp.ne.s32.totalorder %s55, %s69
      %p71 = scmp.eq.s32.totalorder %s24, 0
      %p72 = por %p70, %p71
      %s74 = sadd.s32 %s73, 1
      %p77 = scmp.eq.s32.totalorder %s18, 1
      %p78 = scmp.ne.s32.totalorder %s73, %s75
      %p79 = scmp.eq.s32.totalorder %s18, 0
      %p80 = por %p78, %p79
      %p81 = scmp.ne.s32.totalorder %s73, %s75
      %p82 = scmp.eq.s32.totalorder %s23, 1
      %p83 = por %p81, %p82
      %p84 = scmp.ne.s32.totalorder %s75, %s76
      %p85 = scmp.eq.s32.totalorder %s23, 0
      %p86 = por %p84, %p85
      %p87 = scmp.ne.s32.totalorder %s75, %s76
      %p88 = scmp.eq.s32.totalorder %s24, 1
      %p89 = por %p87, %p88
      %p91 = scmp.ne.s32.totalorder %s76, %s90
      %p92 = scmp.eq.s32.totalorder %s24, 0
      %p93 = por %p91, %p92
      %s95 = sadd.s32 %s94, 1
      %p98 = scmp.eq.s32.totalorder %s18, 1
      %p99 = scmp.ne.s32.totalorder %s94, %s96
      %p100 = scmp.eq.s32.totalorder %s18, 0
      %p101 = por %p99, %p100
      %p102 = scmp.ne.s32.totalorder %s94, %s96
      %p103 = scmp.eq.s32.totalorder %s23, 1
      %p104 = por %p102, %p103
      %p105 = scmp.ne.s32.totalorder %s96, %s97
      %p106 = scmp.eq.s32.totalorder %s23, 0
      %p107 = por %p105, %p106
      %p108 = scmp.ne.s32.totalorder %s96, %s97
      %p109 = scmp.eq.s32.totalorder %s24, 1
      %p110 = por %p108, %p109
      %p112 = scmp.ne.s32.totalorder %s97, %s111
      %p113 = scmp.eq.s32.totalorder %s24, 0
      %p114 = por %p112, %p113
      %s116 = sadd.s32 %s115, 1
      %p119 = scmp.eq.s32.totalorder %s18, 1
      %p120 = scmp.ne.s32.totalorder %s115, %s117
      %p121 = scmp.eq.s32.totalorder %s18, 0
      %p122 = por %p120, %p121
      %p123 = scmp.ne.s32.totalorder %s115, %s117
      %p124 = scmp.eq.s32.totalorder %s23, 1
      %p125 = por %p123, %p124
      %p126 = scmp.ne.s32.totalorder %s117, %s118
      %p127 = scmp.eq.s32.totalorder %s23, 0
      %p128 = por %p126, %p127
      %p129 = scmp.ne.s32.totalorder %s117, %s118
      %p130 = scmp.eq.s32.totalorder %s24, 1
      %p131 = por %p129, %p130
      %p133 = scmp.ne.s32.totalorder %s118, %s132
      %p134 = scmp.eq.s32.totalorder %s24, 0
      %p135 = por %p133, %p134
      %s137 = sadd.s32 %s136, 1
      %p140 = scmp.eq.s32.totalorder %s18, 1
      %p141 = scmp.ne.s32.totalorder %s136, %s138
      %p142 = scmp.eq.s32.totalorder %s18, 0
      %p143 = por %p141, %p142
      %p144 = scmp.ne.s32.totalorder %s136, %s138
      %p145 = scmp.eq.s32.totalorder %s23, 1
      %p146 = por %p144, %p145
      %p147 = scmp.ne.s32.totalorder %s138, %s139
      %p148 = scmp.eq.s32.totalorder %s23, 0
      %p149 = por %p147, %p148
      %p150 = scmp.ne.s32.totalorder %s138, %s139
      %p151 = scmp.eq.s32.totalorder %s24, 1
      %p152 = por %p150, %p151
      %p154 = scmp.ne.s32.totalorder %s139, %s153
      %p155 = scmp.eq.s32.totalorder %s24, 0
      %p156 = por %p154, %p155
      %s158 = sadd.s32 %s157, 1
      %p161 = scmp.eq.s32.totalorder %s18, 1
      %p162 = scmp.ne.s32.totalorder %s157, %s159
      %p163 = scmp.eq.s32.totalorder %s18, 0
      %p164 = por %p162, %p163
      %p165 = scmp.ne.s32.totalorder %s157, %s159
      %p166 = scmp.eq.s32.totalorder %s23, 1
      %p167 = por %p165, %p166
      %p168 = scmp.ne.s32.totalorder %s159, %s160
      %p169 = scmp.eq.s32.totalorder %s23, 0
      %p170 = por %p168, %p169
      %p171 = scmp.ne.s32.totalorder %s159, %s160
      %p172 = scmp.eq.s32.totalorder %s24, 1
      %p173 = por %p171, %p172
      %p175 = scmp.ne.s32.totalorder %s160, %s174
      %p176 = scmp.eq.s32.totalorder %s24, 0
      %p177 = por %p175, %p176
      %s179 = sadd.s32 %s178, 1
      %p182 = scmp.eq.s32.totalorder %s18, 1
      %p183 = scmp.ne.s32.totalorder %s178, %s180
      %p184 = scmp.eq.s32.totalorder %s18, 0
      %p185 = por %p183, %p184
      %p186 = scmp.ne.s32.totalorder %s178, %s180
      %p187 = scmp.eq.s32.totalorder %s23, 1
      %p188 = por %p186, %p187
      %p189 = scmp.ne.s32.totalorder %s180, %s181
      %p190 = scmp.eq.s32.totalorder %s23, 0
      %p191 = por %p189, %p190
      %p192 = scmp.ne.s32.totalorder %s180, %s181
      %p193 = scmp.eq.s32.totalorder %s24, 1
      %p194 = por %p192, %p193
      %p196 = scmp.ne.s32.totalorder %s181, %s195
      %p197 = scmp.eq.s32.totalorder %s24, 0
      %p198 = por %p196, %p197
      %s200 = sadd.s32 %s199, 1
      %p203 = scmp.eq.s32.totalorder %s18, 1
      %p204 = scmp.ne.s32.totalorder %s199, %s201
      %p205 = scmp.eq.s32.totalorder %s18, 0
      %p206 = por %p204, %p205
      %p207 = scmp.ne.s32.totalorder %s199, %s201
      %p208 = scmp.eq.s32.totalorder %s23, 1
      %p209 = por %p207, %p208
      %p210 = scmp.ne.s32.totalorder %s201, %s202
      %p211 = scmp.eq.s32.totalorder %s23, 0
      %p212 = por %p210, %p211
      %p213 = scmp.ne.s32.totalorder %s201, %s202
      %p214 = scmp.eq.s32.totalorder %s24, 1
      %p215 = por %p213, %p214
      %p217 = scmp.ne.s32.totalorder %s202, %s216
      %p218 = scmp.eq.s32.totalorder %s24, 0
      %p219 = por %p217, %p218
      %s220 = ssub.s32 %s18, %s25
      %p221 = scmp.eq.s32.totalorder %s220, 0
      %s223 = sadd.s32 %s222, 1
      %s224 = scalar_select %p221, %s222, %s223
      %p227 = pneg %p221
      %p228 = scmp.eq.s32.totalorder %s18, 1
      %p229 = por %p227, %p228
      %p230 = scmp.ne.s32.totalorder %s222, %s225
      %p231 = scmp.eq.s32.totalorder %s18, 0
      %p232 = por %p230, %p231
      %p233 = scmp.ne.s32.totalorder %s222, %s225
      %p234 = scmp.eq.s32.totalorder %s23, 1
      %p235 = por %p233, %p234
      %p236 = scmp.ne.s32.totalorder %s225, %s226
      %p237 = scmp.eq.s32.totalorder %s23, 0
      %p238 = por %p236, %p237
      %p239 = scmp.ne.s32.totalorder %s225, %s226
      %p240 = scmp.eq.s32.totalorder %s24, 1
      %p241 = por %p239, %p240
      %p243 = scmp.ne.s32.totalorder %s226, %s242
      %p244 = scmp.eq.s32.totalorder %s24, 0
      %p245 = por %p243, %p244
      %p246 = scmp.le.s32.totalorder 1, %s18
      %p247 = scmp.lt.s32.totalorder %s18, 3
      %p248 = pnand %p246, %p247
      %p249 = pneg %p248
      // Predicated region
      $region9: #{tpu_custom_call.1} parent=5 // pred_check
        _
      $region10: #{tpu_custom_call.1} parent=5 // pred_check_branch
        %251 = sbr.rel (%p248) target = $region12
      $region11: #{tpu_custom_call.1} parent=5 // pred_region
        %s252 = ssub.s32 %s18, 1
        // Predicated region
        $region13: #{tpu_custom_call.1} parent=11 // pred_check
          %p253 = pneg %p65
        $region14: #{tpu_custom_call.1} parent=11 // pred_check_branch
          %255 = sbr.rel (%p253) target = $region16
        $region15: #{tpu_custom_call.1} parent=11 // pred_region
          _
        $region16: #{tpu_custom_call.1} parent=11 // pred_fallthru
          _
        // Predicated region
        $region17: #{tpu_custom_call.1} parent=11 // pred_check
          %p256 = pneg %p86
        $region18: #{tpu_custom_call.1} parent=11 // pred_check_branch
          %258 = sbr.rel (%p256) target = $region20
        $region19: #{tpu_custom_call.1} parent=11 // pred_region
          _
        $region20: #{tpu_custom_call.1} parent=11 // pred_fallthru
          _
        // Predicated region
        $region21: #{tpu_custom_call.1} parent=11 // pred_check
          %p259 = pneg %p107
        $region22: #{tpu_custom_call.1} parent=11 // pred_check_branch
          %261 = sbr.rel (%p259) target = $region24
        $region23: #{tpu_custom_call.1} parent=11 // pred_region
          _
        $region24: #{tpu_custom_call.1} parent=11 // pred_fallthru
          _
        // Predicated region
        $region25: #{tpu_custom_call.1} parent=11 // pred_check
          %p262 = pneg %p128
        $region26: #{tpu_custom_call.1} parent=11 // pred_check_branch
          %264 = sbr.rel (%p262) target = $region28
        $region27: #{tpu_custom_call.1} parent=11 // pred_region
          _
        $region28: #{tpu_custom_call.1} parent=11 // pred_fallthru
          _
        // Predicated region
        $region29: #{tpu_custom_call.1} parent=11 // pred_check
          %p265 = pneg %p149
        $region30: #{tpu_custom_call.1} parent=11 // pred_check_branch
          %267 = sbr.rel (%p265) target = $region32
        $region31: #{tpu_custom_call.1} parent=11 // pred_region
          _
        $region32: #{tpu_custom_call.1} parent=11 // pred_fallthru
          _
        // Predicated region
        $region33: #{tpu_custom_call.1} parent=11 // pred_check
          %p268 = pneg %p170
        $region34: #{tpu_custom_call.1} parent=11 // pred_check_branch
          %270 = sbr.rel (%p268) target = $region36
        $region35: #{tpu_custom_call.1} parent=11 // pred_region
          _
        $region36: #{tpu_custom_call.1} parent=11 // pred_fallthru
          _
        // Predicated region
        $region37: #{tpu_custom_call.1} parent=11 // pred_check
          %p271 = pneg %p191
        $region38: #{tpu_custom_call.1} parent=11 // pred_check_branch
          %273 = sbr.rel (%p271) target = $region40
        $region39: #{tpu_custom_call.1} parent=11 // pred_region
          _
        $region40: #{tpu_custom_call.1} parent=11 // pred_fallthru
          _
        // Predicated region
        $region41: #{tpu_custom_call.1} parent=11 // pred_check
          %p274 = pneg %p212
        $region42: #{tpu_custom_call.1} parent=11 // pred_check_branch
          %276 = sbr.rel (%p274) target = $region44
        $region43: #{tpu_custom_call.1} parent=11 // pred_region
          _
        $region44: #{tpu_custom_call.1} parent=11 // pred_fallthru
          _
      $region12: #{tpu_custom_call.1} parent=5 // pred_fallthru
        _
      %p277 = scmp.lt.s32.totalorder %s18, 2
      // Predicated region
      $region45: #{tpu_custom_call.1} parent=5 // pred_check
        %p278 = pneg %p277
      $region46: #{tpu_custom_call.1} parent=5 // pred_check_branch
        %280 = sbr.rel (%p278) target = $region48
      $region47: #{tpu_custom_call.1} parent=5 // pred_region
        // Predicated region
        $region49: #{tpu_custom_call.1} parent=47 // pred_check
          %p281 = pneg %p38
        $region50: #{tpu_custom_call.1} parent=47 // pred_check_branch
          %283 = sbr.rel (%p281) target = $region52
        $region51: #{tpu_custom_call.1} parent=47 // pred_region
          %p284 = scmp.lt.s32.totalorder %s18, 1
          %s285 = scalar_select %p284, %s18, 1
          %s286 = smul.addr %s285, 4
          %s287 = smul.addr %s286, 8
          %s288 = scalar_lea.vmem %s0, %s287
        $region52: #{tpu_custom_call.1} parent=47 // pred_fallthru
          _
      $region48: #{tpu_custom_call.1} parent=5 // pred_fallthru
        _
      %p289 = scmp.le.s32.totalorder 1, %s18
      %p290 = scmp.lt.s32.totalorder %s18, 3
      %p291 = pnand %p289, %p290
      %p292 = pneg %p291
      // Predicated region
      $region53: #{tpu_custom_call.1} parent=5 // pred_check
        _
      $region54: #{tpu_custom_call.1} parent=5 // pred_check_branch
        %294 = sbr.rel (%p291) target = $region56
      $region55: #{tpu_custom_call.1} parent=5 // pred_region
        %s295 = ssub.s32 %s18, 1
        %p296 = scmp.lt.s32.totalorder %s23, 1
        %s297 = scalar_select %p296, %s23, 1
        %s298 = smul.addr %s297, 4
        %s299 = smul.addr %s298, 8
        %s300 = scalar_lea.vmem %s0, %s299
        %p301 = pneg %p44
        %p302 = pneg %p41
        %p303 = pneg %p65
        %p304 = pneg %p62
        %p305 = pneg %p86
        %p306 = pneg %p83
        %p307 = pneg %p107
        %p308 = pneg %p104
        %p309 = pneg %p128
        %p310 = pneg %p125
        %p311 = pneg %p149
        %p312 = pneg %p146
        %p313 = pneg %p170
        %p314 = pneg %p167
        %p315 = pneg %p191
        %p316 = pneg %p188
        %p317 = pneg %p212
        %p318 = pneg %p209
        %p319 = pneg %p238
        %p320 = pneg %p235
        %s321 = sand.u32 %s225, 1
        %s322 = scalar_lea.sflag [#allocation3], %s321
        %s323 = sand.u32 %s225, 1
        %s324 = smul.addr %s323, 32
        %s325 = scalar_lea.vmem [#allocation2], %s324
        %p326 = scmp.lt.s32.totalorder %s23, 1
        %s327 = scalar_select %p326, %s23, 1
        %s328 = smul.addr %s327, 4
        %s329 = smul.addr %s328, 8
        %s330 = scalar_lea.vmem %s0, %s329
        %v331 = vld [vmem:[%s330] sm:$0xff]
        %v332 = vld [vmem:[%s330 + $0x8] sm:$0xff]
        %v333 = vld [vmem:[%s330 + $0x10] sm:$0xff]
        %v334 = vld [vmem:[%s330 + $0x18] sm:$0xff]
        %v335 = vlaneseq
        %v336 = vand.u32 %v335, 127
        %v337 = vadd.s32 %v336, 128
        %vm338 = vcmp.lt.s32.totalorder %v336, 200
        %vm339 = vcmp.lt.s32.totalorder %v337, 200
        %v340 = vld [vmem:[%s1] sm:$0xff]
        %v341 = vld [vmem:[%s1 + $0x8] sm:$0xff]
        %v342 = vld [vmem:[%s1 + $0x10] sm:$0xff]
        %v343 = vld [vmem:[%s1 + $0x18] sm:$0xff]
        %v344 = vld [vmem:[%s2] sm:$0xff]
        %v345 = vld [vmem:[%s2 + $0x8] sm:$0xff]
        %v346 = vld [vmem:[%s2 + $0x10] sm:$0xff]
        %v347 = vld [vmem:[%s2 + $0x18] sm:$0xff]
        %349 = vset.pattern.permute.xlu0 0
        %350 = vperm.xlu0 %349, %v344
        %v351 = vpop.permute.xlu0 %350
        %354 = vset.pattern.permute.xlu0 0
        %355 = vperm.xlu0 %354, %v345
        %v356 = vpop.permute.xlu0 %355
        %359 = vset.pattern.permute.xlu0 0
        %360 = vperm.xlu0 %359, %v346
        %v361 = vpop.permute.xlu0 %360
        %364 = vset.pattern.permute.xlu0 0
        %365 = vperm.xlu0 %364, %v347
        %v366 = vpop.permute.xlu0 %365
        %vm368 = vcmask 130048
        %v370 = vsel %vm368, %v340, 0
        %v373 = vsel %vm368, %v341, 0
        %v376 = vsel %vm368, %v342, 0
        %v379 = vsel %vm368, %v343, 0
        %381 = vmatpush.msra.mxu0 0.0
        %382 = vmatpush.msra.mxu0 0.0
        %383 = vmatpush.msra.mxu0 0.0
        %384 = vmatpush.msra.mxu0 0.0
        %385 = vmatpush.msra.mxu0 0.0
        %386 = vmatpush.msra.mxu0 0.0
        %387 = vmatpush.msra.mxu0 0.0
        %388 = vmatpush.msra.mxu0 0.0
        %389 = vmatpush.msra.mxu0 0.0
        %390 = vmatpush.msra.mxu0 0.0
        %391 = vmatpush.msra.mxu0 0.0
        %392 = vmatpush.msra.mxu0 0.0
        %393 = vmatpush.msra.mxu0 0.0
        %394 = vmatpush.msra.mxu0 0.0
        %395 = vmatpush.msra.mxu0 %v333
        %396 = vmatpush.msra.mxu0 %v331
        %397 = vmatmul.f32.gmra.mxu0 %v370
        %v398 = vpop.f32.mrf.mxu0
        %v399 = vadd.f32 %v351, %v398
        %400 = vmatmul.f32.gmra.mxu0 %v373
        %v401 = vpop.f32.mrf.mxu0
        %v402 = vadd.f32 %v356, %v401
        %403 = vmatmul.f32.gmra.mxu0 %v376
        %v404 = vpop.f32.mrf.mxu0
        %v405 = vadd.f32 %v361, %v404
        %406 = vmatmul.f32.gmra.mxu0 %v379
        %v407 = vpop.f32.mrf.mxu0
        %v408 = vadd.f32 %v366, %v407
        %409 = vdwg.mxu0
        %410 = vmatpush.msra.mxu0 0.0
        %411 = vmatpush.msra.mxu0 0.0
        %412 = vmatpush.msra.mxu0 0.0
        %413 = vmatpush.msra.mxu0 0.0
        %414 = vmatpush.msra.mxu0 0.0
        %415 = vmatpush.msra.mxu0 0.0
        %416 = vmatpush.msra.mxu0 0.0
        %417 = vmatpush.msra.mxu0 0.0
        %418 = vmatpush.msra.mxu0 0.0
        %419 = vmatpush.msra.mxu0 0.0
        %420 = vmatpush.msra.mxu0 0.0
        %421 = vmatpush.msra.mxu0 0.0
        %422 = vmatpush.msra.mxu0 0.0
        %423 = vmatpush.msra.mxu0 0.0
        %424 = vmatpush.msra.mxu0 %v334
        %425 = vmatpush.msra.mxu0 %v332
        %426 = vmatmul.f32.gmra.mxu0 %v370
        %v427 = vpop.f32.mrf.mxu0
        %v428 = vadd.f32 %v351, %v427
        %429 = vmatmul.f32.gmra.mxu0 %v373
        %v430 = vpop.f32.mrf.mxu0
        %v431 = vadd.f32 %v356, %v430
        %432 = vmatmul.f32.gmra.mxu0 %v376
        %v433 = vpop.f32.mrf.mxu0
        %v434 = vadd.f32 %v361, %v433
        %435 = vmatmul.f32.gmra.mxu0 %v379
        %v436 = vpop.f32.mrf.mxu0
        %v437 = vadd.f32 %v366, %v436
        %438 = vdwg.mxu0
        %v439 = vsel %vm338, %v399, 0.0
        %v440 = vsel %vm339, %v428, 0.0
        %v441 = vsel %vm338, %v402, 0.0
        %v442 = vsel %vm339, %v431, 0.0
        %v443 = vsel %vm338, %v405, 0.0
        %v444 = vsel %vm339, %v434, 0.0
        %v445 = vsel %vm338, %v408, 0.0
        %v446 = vsel %vm339, %v437, 0.0
        %v447 = vld [vmem:[%s3] sm:$0xff]
        %v448 = vld [vmem:[%s3 + $0x8] sm:$0xff]
        %v449 = vld [vmem:[%s3 + $0x10] sm:$0xff]
        %v450 = vld [vmem:[%s3 + $0x18] sm:$0xff]
        %v451 = vld [vmem:[%s3 + $0x20] sm:$0xff]
        %v452 = vld [vmem:[%s3 + $0x28] sm:$0xff]
        %v453 = vld [vmem:[%s3 + $0x30] sm:$0xff]
        %v454 = vld [vmem:[%s3 + $0x38] sm:$0xff]
        %v455 = vld [vmem:[%s3 + $0x40] sm:$0xff]
        %v456 = vld [vmem:[%s3 + $0x48] sm:$0xff]
        %v457 = vld [vmem:[%s3 + $0x50] sm:$0xff]
        %v458 = vld [vmem:[%s3 + $0x58] sm:$0xff]
        %vm459 = vcmask 261120
        %v461 = vsel %vm459, %v447, 0
        %v464 = vsel %vm459, %v448, 0
        %v467 = vsel %vm459, %v449, 0
        %v470 = vsel %vm459, %v450, 0
        %v473 = vsel %vm459, %v451, 0
        %v476 = vsel %vm459, %v452, 0
        %v479 = vsel %vm459, %v453, 0
        %v482 = vsel %vm459, %v454, 0
        %v485 = vsel %vm459, %v455, 0
        %v488 = vsel %vm459, %v456, 0
        %v491 = vsel %vm459, %v457, 0
        %v494 = vsel %vm459, %v458, 0
        %496 = vmatpush.msra.mxu0 0.0
        %497 = vmatpush.msra.mxu0 0.0
        %498 = vmatpush.msra.mxu0 0.0
        %499 = vmatpush.msra.mxu0 0.0
        %500 = vmatpush.msra.mxu0 0.0
        %501 = vmatpush.msra.mxu0 0.0
        %502 = vmatpush.msra.mxu0 0.0
        %503 = vmatpush.msra.mxu0 0.0
        %504 = vmatpush.msra.mxu0 0.0
        %505 = vmatpush.msra.mxu0 0.0
        %506 = vmatpush.msra.mxu0 0.0
        %507 = vmatpush.msra.mxu0 0.0
        %508 = vmatpush.msra.mxu0 %v445
        %509 = vmatpush.msra.mxu0 %v443
        %510 = vmatpush.msra.mxu0 %v441
        %511 = vmatpush.msra.mxu0 %v439
        %512 = vmatmul.f32.gmra.mxu0 %v461
        %v513 = vpop.f32.mrf.mxu0
        %v514 = vadd.f32 0.0, %v513
        %515 = vmatmul.f32.gmra.mxu0 %v464
        %v516 = vpop.f32.mrf.mxu0
        %v517 = vadd.f32 0.0, %v516
        %518 = vmatmul.f32.gmra.mxu0 %v467
        %v519 = vpop.f32.mrf.mxu0
        %v520 = vadd.f32 0.0, %v519
        %521 = vmatmul.f32.gmra.mxu0 %v470
        %v522 = vpop.f32.mrf.mxu0
        %v523 = vadd.f32 0.0, %v522
        %524 = vmatmul.f32.gmra.mxu0 %v473
        %v525 = vpop.f32.mrf.mxu0
        %v526 = vadd.f32 0.0, %v525
        %527 = vmatmul.f32.gmra.mxu0 %v476
        %v528 = vpop.f32.mrf.mxu0
        %v529 = vadd.f32 0.0, %v528
        %530 = vmatmul.f32.gmra.mxu0 %v479
        %v531 = vpop.f32.mrf.mxu0
        %v532 = vadd.f32 0.0, %v531
        %533 = vmatmul.f32.gmra.mxu0 %v482
        %v534 = vpop.f32.mrf.mxu0
        %v535 = vadd.f32 0.0, %v534
        %536 = vmatmul.f32.gmra.mxu0 %v485
        %v537 = vpop.f32.mrf.mxu0
        %v538 = vadd.f32 0.0, %v537
        %539 = vmatmul.f32.gmra.mxu0 %v488
        %v540 = vpop.f32.mrf.mxu0
        %v541 = vadd.f32 0.0, %v540
        %542 = vmatmul.f32.gmra.mxu0 %v491
        %v543 = vpop.f32.mrf.mxu0
        %v544 = vadd.f32 0.0, %v543
        %545 = vmatmul.f32.gmra.mxu0 %v494
        %v546 = vpop.f32.mrf.mxu0
        %v547 = vadd.f32 0.0, %v546
        %548 = vdwg.mxu0
        %549 = vmatpush.msra.mxu0 0.0
        %550 = vmatpush.msra.mxu0 0.0
        %551 = vmatpush.msra.mxu0 0.0
        %552 = vmatpush.msra.mxu0 0.0
        %553 = vmatpush.msra.mxu0 0.0
        %554 = vmatpush.msra.mxu0 0.0
        %555 = vmatpush.msra.mxu0 0.0
        %556 = vmatpush.msra.mxu0 0.0
        %557 = vmatpush.msra.mxu0 0.0
        %558 = vmatpush.msra.mxu0 0.0
        %559 = vmatpush.msra.mxu0 0.0
        %560 = vmatpush.msra.mxu0 0.0
        %561 = vmatpush.msra.mxu0 %v446
        %562 = vmatpush.msra.mxu0 %v444
        %563 = vmatpush.msra.mxu0 %v442
        %564 = vmatpush.msra.mxu0 %v440
        %565 = vmatmul.f32.gmra.mxu0 %v461
        %v566 = vpop.f32.mrf.mxu0
        %v567 = vadd.f32 0.0, %v566
        %568 = vmatmul.f32.gmra.mxu0 %v464
        %v569 = vpop.f32.mrf.mxu0
        %v570 = vadd.f32 0.0, %v569
        %571 = vmatmul.f32.gmra.mxu0 %v467
        %v572 = vpop.f32.mrf.mxu0
        %v573 = vadd.f32 0.0, %v572
        %574 = vmatmul.f32.gmra.mxu0 %v470
        %v575 = vpop.f32.mrf.mxu0
        %v576 = vadd.f32 0.0, %v575
        %577 = vmatmul.f32.gmra.mxu0 %v473
        %v578 = vpop.f32.mrf.mxu0
        %v579 = vadd.f32 0.0, %v578
        %580 = vmatmul.f32.gmra.mxu0 %v476
        %v581 = vpop.f32.mrf.mxu0
        %v582 = vadd.f32 0.0, %v581
        %583 = vmatmul.f32.gmra.mxu0 %v479
        %v584 = vpop.f32.mrf.mxu0
        %v585 = vadd.f32 0.0, %v584
        %586 = vmatmul.f32.gmra.mxu0 %v482
        %v587 = vpop.f32.mrf.mxu0
        %v588 = vadd.f32 0.0, %v587
        %589 = vmatmul.f32.gmra.mxu0 %v485
        %v590 = vpop.f32.mrf.mxu0
        %v591 = vadd.f32 0.0, %v590
        %592 = vmatmul.f32.gmra.mxu0 %v488
        %v593 = vpop.f32.mrf.mxu0
        %v594 = vadd.f32 0.0, %v593
        %595 = vmatmul.f32.gmra.mxu0 %v491
        %v596 = vpop.f32.mrf.mxu0
        %v597 = vadd.f32 0.0, %v596
        %598 = vmatmul.f32.gmra.mxu0 %v494
        %v599 = vpop.f32.mrf.mxu0
        %v600 = vadd.f32 0.0, %v599
        %601 = vdwg.mxu0
        %602 = vrot.lane.b32.xlu0 %v514, 1
        %v603 = vpop.permute.xlu0 %602
        %604 = vrot.lane.b32.xlu0 %v517, 1
        %v605 = vpop.permute.xlu0 %604
        %606 = vrot.lane.b32.xlu0 %v520, 1
        %v607 = vpop.permute.xlu0 %606
        %608 = vrot.lane.b32.xlu0 %v523, 1
        %v609 = vpop.permute.xlu0 %608
        %610 = vrot.lane.b32.xlu0 %v567, 1
        %v611 = vpop.permute.xlu0 %610
        %612 = vrot.lane.b32.xlu0 %v570, 1
        %v613 = vpop.permute.xlu0 %612
        %614 = vrot.lane.b32.xlu0 %v573, 1
        %v615 = vpop.permute.xlu0 %614
        %616 = vrot.lane.b32.xlu0 %v576, 1
        %v617 = vpop.permute.xlu0 %616
        %vm618 = vcmp.lt.s32.totalorder %v336, 1
        %v619 = vsel %vm618, %v603, %v611
        %v620 = vsel %vm618, %v605, %v613
        %v621 = vsel %vm618, %v607, %v615
        %v622 = vsel %vm618, %v609, %v617
        %v623 = vsel %vm618, %v611, %v603
        %v624 = vsel %vm618, %v613, %v605
        %v625 = vsel %vm618, %v615, %v607
        %v626 = vsel %vm618, %v617, %v609
        %vm627 = vcmp.ge.s32.totalorder %v336, 1
        %vm628 = vcmp.ge.s32.totalorder %v337, 1
        %v629 = vsel %vm627, %v623, 0.0
        %v630 = vsel %vm628, %v619, 0.0
        %v631 = vsel %vm627, %v624, 0.0
        %v632 = vsel %vm628, %v620, 0.0
        %v633 = vsel %vm627, %v625, 0.0
        %v634 = vsel %vm628, %v621, 0.0
        %v635 = vsel %vm627, %v626, 0.0
        %v636 = vsel %vm628, %v622, 0.0
        %637 = vrot.lane.b32.xlu0 %v538, 127
        %v638 = vpop.permute.xlu0 %637
        %639 = vrot.lane.b32.xlu0 %v541, 127
        %v640 = vpop.permute.xlu0 %639
        %641 = vrot.lane.b32.xlu0 %v544, 127
        %v642 = vpop.permute.xlu0 %641
        %643 = vrot.lane.b32.xlu0 %v547, 127
        %v644 = vpop.permute.xlu0 %643
        %645 = vrot.lane.b32.xlu0 %v591, 127
        %v646 = vpop.permute.xlu0 %645
        %647 = vrot.lane.b32.xlu0 %v594, 127
        %v648 = vpop.permute.xlu0 %647
        %649 = vrot.lane.b32.xlu0 %v597, 127
        %v650 = vpop.permute.xlu0 %649
        %651 = vrot.lane.b32.xlu0 %v600, 127
        %v652 = vpop.permute.xlu0 %651
        %vm653 = vcmp.lt.s32.totalorder %v336, 127
        %v654 = vsel %vm653, %v638, %v646
        %v655 = vsel %vm653, %v640, %v648
        %v656 = vsel %vm653, %v642, %v650
        %v657 = vsel %vm653, %v644, %v652
        %v658 = vsel %vm653, %v646, %v638
        %v659 = vsel %vm653, %v648, %v640
        %v660 = vsel %vm653, %v650, %v642
        %v661 = vsel %vm653, %v652, %v644
        %vm662 = vcmp.lt.s32.totalorder %v336, 255
        %vm663 = vcmp.lt.s32.totalorder %v337, 255
        %v664 = vsel %vm662, %v654, 0.0
        %v665 = vsel %vm663, %v658, 0.0
        %v666 = vsel %vm662, %v655, 0.0
        %v667 = vsel %vm663, %v659, 0.0
        %v668 = vsel %vm662, %v656, 0.0
        %v669 = vsel %vm663, %v660, 0.0
        %v670 = vsel %vm662, %v657, 0.0
        %v671 = vsel %vm663, %v661, 0.0
        %v672 = vadd.f32 %v629, %v526
        %v673 = vadd.f32 %v630, %v579
        %v674 = vadd.f32 %v631, %v529
        %v675 = vadd.f32 %v632, %v582
        %v676 = vadd.f32 %v633, %v532
        %v677 = vadd.f32 %v634, %v585
        %v678 = vadd.f32 %v635, %v535
        %v679 = vadd.f32 %v636, %v588
        %v680 = vadd.f32 %v672, %v664
        %v681 = vadd.f32 %v673, %v665
        %v682 = vadd.f32 %v674, %v666
        %v683 = vadd.f32 %v675, %v667
        %v684 = vadd.f32 %v676, %v668
        %v685 = vadd.f32 %v677, %v669
        %v686 = vadd.f32 %v678, %v670
        %v687 = vadd.f32 %v679, %v671
        %v688 = vld [vmem:[%s4] sm:$0xff]
        %v689 = vld [vmem:[%s4 + $0x8] sm:$0xff]
        %v690 = vld [vmem:[%s4 + $0x10] sm:$0xff]
        %v691 = vld [vmem:[%s4 + $0x18] sm:$0xff]
        %693 = vset.pattern.permute.xlu0 0
        %694 = vperm.xlu0 %693, %v688
        %v695 = vpop.permute.xlu0 %694
        %698 = vset.pattern.permute.xlu0 0
        %699 = vperm.xlu0 %698, %v689
        %v700 = vpop.permute.xlu0 %699
        %703 = vset.pattern.permute.xlu0 0
        %704 = vperm.xlu0 %703, %v690
        %v705 = vpop.permute.xlu0 %704
        %708 = vset.pattern.permute.xlu0 0
        %709 = vperm.xlu0 %708, %v691
        %v710 = vpop.permute.xlu0 %709
        %v712 = vadd.f32 %v680, %v695
        %v713 = vadd.f32 %v681, %v695
        %v714 = vadd.f32 %v682, %v700
        %v715 = vadd.f32 %v683, %v700
        %v716 = vadd.f32 %v684, %v705
        %v717 = vadd.f32 %v685, %v705
        %v718 = vadd.f32 %v686, %v710
        %v719 = vadd.f32 %v687, %v710
        %v720 = vmax.f32 %v712, 0.0
        %v721 = vmax.f32 %v713, 0.0
        %v722 = vmax.f32 %v714, 0.0
        %v723 = vmax.f32 %v715, 0.0
        %v724 = vmax.f32 %v716, 0.0
        %v725 = vmax.f32 %v717, 0.0
        %v726 = vmax.f32 %v718, 0.0
        %v727 = vmax.f32 %v719, 0.0
        %v728 = vld [vmem:[%s5] sm:$0xff]
        %v729 = vld [vmem:[%s5 + $0x8] sm:$0xff]
        %v730 = vld [vmem:[%s5 + $0x10] sm:$0xff]
        %v731 = vld [vmem:[%s5 + $0x18] sm:$0xff]
        %v732 = vld [vmem:[%s6] sm:$0xff]
        %v733 = vld [vmem:[%s6 + $0x8] sm:$0xff]
        %v734 = vld [vmem:[%s6 + $0x10] sm:$0xff]
        %v735 = vld [vmem:[%s6 + $0x18] sm:$0xff]
        %737 = vset.pattern.permute.xlu0 0
        %738 = vperm.xlu0 %737, %v732
        %v739 = vpop.permute.xlu0 %738
        %742 = vset.pattern.permute.xlu0 0
        %743 = vperm.xlu0 %742, %v733
        %v744 = vpop.permute.xlu0 %743
        %747 = vset.pattern.permute.xlu0 0
        %748 = vperm.xlu0 %747, %v734
        %v749 = vpop.permute.xlu0 %748
        %752 = vset.pattern.permute.xlu0 0
        %753 = vperm.xlu0 %752, %v735
        %v754 = vpop.permute.xlu0 %753
        %v757 = vsel %vm459, %v728, 0
        %v760 = vsel %vm459, %v729, 0
        %v763 = vsel %vm459, %v730, 0
        %v766 = vsel %vm459, %v731, 0
        %768 = vmatpush.msra.mxu0 0.0
        %769 = vmatpush.msra.mxu0 0.0
        %770 = vmatpush.msra.mxu0 0.0
        %771 = vmatpush.msra.mxu0 0.0
        %772 = vmatpush.msra.mxu0 0.0
        %773 = vmatpush.msra.mxu0 0.0
        %774 = vmatpush.msra.mxu0 0.0
        %775 = vmatpush.msra.mxu0 0.0
        %776 = vmatpush.msra.mxu0 0.0
        %777 = vmatpush.msra.mxu0 0.0
        %778 = vmatpush.msra.mxu0 0.0
        %779 = vmatpush.msra.mxu0 0.0
        %780 = vmatpush.msra.mxu0 %v726
        %781 = vmatpush.msra.mxu0 %v724
        %782 = vmatpush.msra.mxu0 %v722
        %783 = vmatpush.msra.mxu0 %v720
        %784 = vmatmul.f32.gmra.mxu0 %v757
        %v785 = vpop.f32.mrf.mxu0
        %v786 = vadd.f32 %v739, %v785
        %787 = vmatmul.f32.gmra.mxu0 %v760
        %v788 = vpop.f32.mrf.mxu0
        %v789 = vadd.f32 %v744, %v788
        %790 = vmatmul.f32.gmra.mxu0 %v763
        %v791 = vpop.f32.mrf.mxu0
        %v792 = vadd.f32 %v749, %v791
        %793 = vmatmul.f32.gmra.mxu0 %v766
        %v794 = vpop.f32.mrf.mxu0
        %v795 = vadd.f32 %v754, %v794
        %796 = vdwg.mxu0
        %797 = vmatpush.msra.mxu0 0.0
        %798 = vmatpush.msra.mxu0 0.0
        %799 = vmatpush.msra.mxu0 0.0
        %800 = vmatpush.msra.mxu0 0.0
        %801 = vmatpush.msra.mxu0 0.0
        %802 = vmatpush.msra.mxu0 0.0
        %803 = vmatpush.msra.mxu0 0.0
        %804 = vmatpush.msra.mxu0 0.0
        %805 = vmatpush.msra.mxu0 0.0
        %806 = vmatpush.msra.mxu0 0.0
        %807 = vmatpush.msra.mxu0 0.0
        %808 = vmatpush.msra.mxu0 0.0
        %809 = vmatpush.msra.mxu0 %v727
        %810 = vmatpush.msra.mxu0 %v725
        %811 = vmatpush.msra.mxu0 %v723
        %812 = vmatpush.msra.mxu0 %v721
        %813 = vmatmul.f32.gmra.mxu0 %v757
        %v814 = vpop.f32.mrf.mxu0
        %v815 = vadd.f32 %v739, %v814
        %816 = vmatmul.f32.gmra.mxu0 %v760
        %v817 = vpop.f32.mrf.mxu0
        %v818 = vadd.f32 %v744, %v817
        %819 = vmatmul.f32.gmra.mxu0 %v763
        %v820 = vpop.f32.mrf.mxu0
        %v821 = vadd.f32 %v749, %v820
        %822 = vmatmul.f32.gmra.mxu0 %v766
        %v823 = vpop.f32.mrf.mxu0
        %v824 = vadd.f32 %v754, %v823
        %825 = vdwg.mxu0
        %v826 = vadd.f32 %v439, %v786
        %v827 = vadd.f32 %v440, %v815
        %v828 = vadd.f32 %v441, %v789
        %v829 = vadd.f32 %v442, %v818
        %v830 = vadd.f32 %v443, %v792
        %v831 = vadd.f32 %v444, %v821
        %v832 = vadd.f32 %v445, %v795
        %v833 = vadd.f32 %v446, %v824
        %v834 = vsel %vm338, %v826, 0.0
        %v835 = vsel %vm339, %v827, 0.0
        %v836 = vsel %vm338, %v828, 0.0
        %v837 = vsel %vm339, %v829, 0.0
        %v838 = vsel %vm338, %v830, 0.0
        %v839 = vsel %vm339, %v831, 0.0
        %v840 = vsel %vm338, %v832, 0.0
        %v841 = vsel %vm339, %v833, 0.0
        %s842 = scalar_lea.vmem %s3, 96
        %v843 = vld [vmem:[%s842] sm:$0xff]
        %v844 = vld [vmem:[%s842 + $0x8] sm:$0xff]
        %v845 = vld [vmem:[%s842 + $0x10] sm:$0xff]
        %v846 = vld [vmem:[%s842 + $0x18] sm:$0xff]
        %v847 = vld [vmem:[%s842 + $0x20] sm:$0xff]
        %v848 = vld [vmem:[%s842 + $0x28] sm:$0xff]
        %v849 = vld [vmem:[%s842 + $0x30] sm:$0xff]
        %v850 = vld [vmem:[%s842 + $0x38] sm:$0xff]
        %v851 = vld [vmem:[%s842 + $0x40] sm:$0xff]
        %v852 = vld [vmem:[%s842 + $0x48] sm:$0xff]
        %v853 = vld [vmem:[%s842 + $0x50] sm:$0xff]
        %v854 = vld [vmem:[%s842 + $0x58] sm:$0xff]
        %v856 = vsel %vm459, %v843, 0
        %v859 = vsel %vm459, %v844, 0
        %v862 = vsel %vm459, %v845, 0
        %v865 = vsel %vm459, %v846, 0
        %v868 = vsel %vm459, %v847, 0
        %v871 = vsel %vm459, %v848, 0
        %v874 = vsel %vm459, %v849, 0
        %v877 = vsel %vm459, %v850, 0
        %v880 = vsel %vm459, %v851, 0
        %v883 = vsel %vm459, %v852, 0
        %v886 = vsel %vm459, %v853, 0
        %v889 = vsel %vm459, %v854, 0
        %891 = vmatpush.msra.mxu0 0.0
        %892 = vmatpush.msra.mxu0 0.0
        %893 = vmatpush.msra.mxu0 0.0
        %894 = vmatpush.msra.mxu0 0.0
        %895 = vmatpush.msra.mxu0 0.0
        %896 = vmatpush.msra.mxu0 0.0
        %897 = vmatpush.msra.mxu0 0.0
        %898 = vmatpush.msra.mxu0 0.0
        %899 = vmatpush.msra.mxu0 0.0
        %900 = vmatpush.msra.mxu0 0.0
        %901 = vmatpush.msra.mxu0 0.0
        %902 = vmatpush.msra.mxu0 0.0
        %903 = vmatpush.msra.mxu0 %v840
        %904 = vmatpush.msra.mxu0 %v838
        %905 = vmatpush.msra.mxu0 %v836
        %906 = vmatpush.msra.mxu0 %v834
        %907 = vmatmul.f32.gmra.mxu0 %v856
        %v908 = vpop.f32.mrf.mxu0
        %v909 = vadd.f32 0.0, %v908
        %910 = vmatmul.f32.gmra.mxu0 %v859
        %v911 = vpop.f32.mrf.mxu0
        %v912 = vadd.f32 0.0, %v911
        %913 = vmatmul.f32.gmra.mxu0 %v862
        %v914 = vpop.f32.mrf.mxu0
        %v915 = vadd.f32 0.0, %v914
        %916 = vmatmul.f32.gmra.mxu0 %v865
        %v917 = vpop.f32.mrf.mxu0
        %v918 = vadd.f32 0.0, %v917
        %919 = vmatmul.f32.gmra.mxu0 %v868
        %v920 = vpop.f32.mrf.mxu0
        %v921 = vadd.f32 0.0, %v920
        %922 = vmatmul.f32.gmra.mxu0 %v871
        %v923 = vpop.f32.mrf.mxu0
        %v924 = vadd.f32 0.0, %v923
        %925 = vmatmul.f32.gmra.mxu0 %v874
        %v926 = vpop.f32.mrf.mxu0
        %v927 = vadd.f32 0.0, %v926
        %928 = vmatmul.f32.gmra.mxu0 %v877
        %v929 = vpop.f32.mrf.mxu0
        %v930 = vadd.f32 0.0, %v929
        %931 = vmatmul.f32.gmra.mxu0 %v880
        %v932 = vpop.f32.mrf.mxu0
        %v933 = vadd.f32 0.0, %v932
        %934 = vmatmul.f32.gmra.mxu0 %v883
        %v935 = vpop.f32.mrf.mxu0
        %v936 = vadd.f32 0.0, %v935
        %937 = vmatmul.f32.gmra.mxu0 %v886
        %v938 = vpop.f32.mrf.mxu0
        %v939 = vadd.f32 0.0, %v938
        %940 = vmatmul.f32.gmra.mxu0 %v889
        %v941 = vpop.f32.mrf.mxu0
        %v942 = vadd.f32 0.0, %v941
        %943 = vdwg.mxu0
        %944 = vmatpush.msra.mxu0 0.0
        %945 = vmatpush.msra.mxu0 0.0
        %946 = vmatpush.msra.mxu0 0.0
        %947 = vmatpush.msra.mxu0 0.0
        %948 = vmatpush.msra.mxu0 0.0
        %949 = vmatpush.msra.mxu0 0.0
        %950 = vmatpush.msra.mxu0 0.0
        %951 = vmatpush.msra.mxu0 0.0
        %952 = vmatpush.msra.mxu0 0.0
        %953 = vmatpush.msra.mxu0 0.0
        %954 = vmatpush.msra.mxu0 0.0
        %955 = vmatpush.msra.mxu0 0.0
        %956 = vmatpush.msra.mxu0 %v841
        %957 = vmatpush.msra.mxu0 %v839
        %958 = vmatpush.msra.mxu0 %v837
        %959 = vmatpush.msra.mxu0 %v835
        %960 = vmatmul.f32.gmra.mxu0 %v856
        %v961 = vpop.f32.mrf.mxu0
        %v962 = vadd.f32 0.0, %v961
        %963 = vmatmul.f32.gmra.mxu0 %v859
        %v964 = vpop.f32.mrf.mxu0
        %v965 = vadd.f32 0.0, %v964
        %966 = vmatmul.f32.gmra.mxu0 %v862
        %v967 = vpop.f32.mrf.mxu0
        %v968 = vadd.f32 0.0, %v967
        %969 = vmatmul.f32.gmra.mxu0 %v865
        %v970 = vpop.f32.mrf.mxu0
        %v971 = vadd.f32 0.0, %v970
        %972 = vmatmul.f32.gmra.mxu0 %v868
        %v973 = vpop.f32.mrf.mxu0
        %v974 = vadd.f32 0.0, %v973
        %975 = vmatmul.f32.gmra.mxu0 %v871
        %v976 = vpop.f32.mrf.mxu0
        %v977 = vadd.f32 0.0, %v976
        %978 = vmatmul.f32.gmra.mxu0 %v874
        %v979 = vpop.f32.mrf.mxu0
        %v980 = vadd.f32 0.0, %v979
        %981 = vmatmul.f32.gmra.mxu0 %v877
        %v982 = vpop.f32.mrf.mxu0
        %v983 = vadd.f32 0.0, %v982
        %984 = vmatmul.f32.gmra.mxu0 %v880
        %v985 = vpop.f32.mrf.mxu0
        %v986 = vadd.f32 0.0, %v985
        %987 = vmatmul.f32.gmra.mxu0 %v883
        %v988 = vpop.f32.mrf.mxu0
        %v989 = vadd.f32 0.0, %v988
        %990 = vmatmul.f32.gmra.mxu0 %v886
        %v991 = vpop.f32.mrf.mxu0
        %v992 = vadd.f32 0.0, %v991
        %993 = vmatmul.f32.gmra.mxu0 %v889
        %v994 = vpop.f32.mrf.mxu0
        %v995 = vadd.f32 0.0, %v994
        %996 = vdwg.mxu0
        %997 = vrot.lane.b32.xlu0 %v909, 2
        %v998 = vpop.permute.xlu0 %997
        %999 = vrot.lane.b32.xlu0 %v912, 2
        %v1000 = vpop.permute.xlu0 %999
        %1001 = vrot.lane.b32.xlu0 %v915, 2
        %v1002 = vpop.permute.xlu0 %1001
        %1003 = vrot.lane.b32.xlu0 %v918, 2
        %v1004 = vpop.permute.xlu0 %1003
        %1005 = vrot.lane.b32.xlu0 %v962, 2
        %v1006 = vpop.permute.xlu0 %1005
        %1007 = vrot.lane.b32.xlu0 %v965, 2
        %v1008 = vpop.permute.xlu0 %1007
        %1009 = vrot.lane.b32.xlu0 %v968, 2
        %v1010 = vpop.permute.xlu0 %1009
        %1011 = vrot.lane.b32.xlu0 %v971, 2
        %v1012 = vpop.permute.xlu0 %1011
        %vm1013 = vcmp.lt.s32.totalorder %v336, 2
        %v1014 = vsel %vm1013, %v998, %v1006
        %v1015 = vsel %vm1013, %v1000, %v1008
        %v1016 = vsel %vm1013, %v1002, %v1010
        %v1017 = vsel %vm1013, %v1004, %v1012
        %v1018 = vsel %vm1013, %v1006, %v998
        %v1019 = vsel %vm1013, %v1008, %v1000
        %v1020 = vsel %vm1013, %v1010, %v1002
        %v1021 = vsel %vm1013, %v1012, %v1004
        %vm1022 = vcmp.ge.s32.totalorder %v336, 2
        %vm1023 = vcmp.ge.s32.totalorder %v337, 2
        %v1024 = vsel %vm1022, %v1018, 0.0
        %v1025 = vsel %vm1023, %v1014, 0.0
        %v1026 = vsel %vm1022, %v1019, 0.0
        %v1027 = vsel %vm1023, %v1015, 0.0
        %v1028 = vsel %vm1022, %v1020, 0.0
        %v1029 = vsel %vm1023, %v1016, 0.0
        %v1030 = vsel %vm1022, %v1021, 0.0
        %v1031 = vsel %vm1023, %v1017, 0.0
        %1032 = vrot.lane.b32.xlu0 %v933, 126
        %v1033 = vpop.permute.xlu0 %1032
        %1034 = vrot.lane.b32.xlu0 %v936, 126
        %v1035 = vpop.permute.xlu0 %1034
        %1036 = vrot.lane.b32.xlu0 %v939, 126
        %v1037 = vpop.permute.xlu0 %1036
        %1038 = vrot.lane.b32.xlu0 %v942, 126
        %v1039 = vpop.permute.xlu0 %1038
        %1040 = vrot.lane.b32.xlu0 %v986, 126
        %v1041 = vpop.permute.xlu0 %1040
        %1042 = vrot.lane.b32.xlu0 %v989, 126
        %v1043 = vpop.permute.xlu0 %1042
        %1044 = vrot.lane.b32.xlu0 %v992, 126
        %v1045 = vpop.permute.xlu0 %1044
        %1046 = vrot.lane.b32.xlu0 %v995, 126
        %v1047 = vpop.permute.xlu0 %1046
        %vm1048 = vcmp.lt.s32.totalorder %v336, 126
        %v1049 = vsel %vm1048, %v1033, %v1041
        %v1050 = vsel %vm1048, %v1035, %v1043
        %v1051 = vsel %vm1048, %v1037, %v1045
        %v1052 = vsel %vm1048, %v1039, %v1047
        %v1053 = vsel %vm1048, %v1041, %v1033
        %v1054 = vsel %vm1048, %v1043, %v1035
        %v1055 = vsel %vm1048, %v1045, %v1037
        %v1056 = vsel %vm1048, %v1047, %v1039
        %vm1057 = vcmp.lt.s32.totalorder %v336, 254
        %vm1058 = vcmp.lt.s32.totalorder %v337, 254
        %v1059 = vsel %vm1057, %v1049, 0.0
        %v1060 = vsel %vm1058, %v1053, 0.0
        %v1061 = vsel %vm1057, %v1050, 0.0
        %v1062 = vsel %vm1058, %v1054, 0.0
        %v1063 = vsel %vm1057, %v1051, 0.0
        %v1064 = vsel %vm1058, %v1055, 0.0
        %v1065 = vsel %vm1057, %v1052, 0.0
        %v1066 = vsel %vm1058, %v1056, 0.0
        %v1067 = vadd.f32 %v1024, %v921
        %v1068 = vadd.f32 %v1025, %v974
        %v1069 = vadd.f32 %v1026, %v924
        %v1070 = vadd.f32 %v1027, %v977
        %v1071 = vadd.f32 %v1028, %v927
        %v1072 = vadd.f32 %v1029, %v980
        %v1073 = vadd.f32 %v1030, %v930
        %v1074 = vadd.f32 %v1031, %v983
        %v1075 = vadd.f32 %v1067, %v1059
        %v1076 = vadd.f32 %v1068, %v1060
        %v1077 = vadd.f32 %v1069, %v1061
        %v1078 = vadd.f32 %v1070, %v1062
        %v1079 = vadd.f32 %v1071, %v1063
        %v1080 = vadd.f32 %v1072, %v1064
        %v1081 = vadd.f32 %v1073, %v1065
        %v1082 = vadd.f32 %v1074, %v1066
        %s1083 = scalar_lea.vmem %s4, 32
        %v1084 = vld [vmem:[%s1083] sm:$0xff]
        %v1085 = vld [vmem:[%s1083 + $0x8] sm:$0xff]
        %v1086 = vld [vmem:[%s1083 + $0x10] sm:$0xff]
        %v1087 = vld [vmem:[%s1083 + $0x18] sm:$0xff]
        %1089 = vset.pattern.permute.xlu0 0
        %1090 = vperm.xlu0 %1089, %v1084
        %v1091 = vpop.permute.xlu0 %1090
        %1094 = vset.pattern.permute.xlu0 0
        %1095 = vperm.xlu0 %1094, %v1085
        %v1096 = vpop.permute.xlu0 %1095
        %1099 = vset.pattern.permute.xlu0 0
        %1100 = vperm.xlu0 %1099, %v1086
        %v1101 = vpop.permute.xlu0 %1100
        %1104 = vset.pattern.permute.xlu0 0
        %1105 = vperm.xlu0 %1104, %v1087
        %v1106 = vpop.permute.xlu0 %1105
        %v1108 = vadd.f32 %v1075, %v1091
        %v1109 = vadd.f32 %v1076, %v1091
        %v1110 = vadd.f32 %v1077, %v1096
        %v1111 = vadd.f32 %v1078, %v1096
        %v1112 = vadd.f32 %v1079, %v1101
        %v1113 = vadd.f32 %v1080, %v1101
        %v1114 = vadd.f32 %v1081, %v1106
        %v1115 = vadd.f32 %v1082, %v1106
        %v1116 = vmax.f32 %v1108, 0.0
        %v1117 = vmax.f32 %v1109, 0.0
        %v1118 = vmax.f32 %v1110, 0.0
        %v1119 = vmax.f32 %v1111, 0.0
        %v1120 = vmax.f32 %v1112, 0.0
        %v1121 = vmax.f32 %v1113, 0.0
        %v1122 = vmax.f32 %v1114, 0.0
        %v1123 = vmax.f32 %v1115, 0.0
        %s1124 = scalar_lea.vmem %s5, 32
        %v1125 = vld [vmem:[%s1124] sm:$0xff]
        %v1126 = vld [vmem:[%s1124 + $0x8] sm:$0xff]
        %v1127 = vld [vmem:[%s1124 + $0x10] sm:$0xff]
        %v1128 = vld [vmem:[%s1124 + $0x18] sm:$0xff]
        %s1129 = scalar_lea.vmem %s6, 32
        %v1130 = vld [vmem:[%s1129] sm:$0xff]
        %v1131 = vld [vmem:[%s1129 + $0x8] sm:$0xff]
        %v1132 = vld [vmem:[%s1129 + $0x10] sm:$0xff]
        %v1133 = vld [vmem:[%s1129 + $0x18] sm:$0xff]
        %1135 = vset.pattern.permute.xlu0 0
        %1136 = vperm.xlu0 %1135, %v1130
        %v1137 = vpop.permute.xlu0 %1136
        %1140 = vset.pattern.permute.xlu0 0
        %1141 = vperm.xlu0 %1140, %v1131
        %v1142 = vpop.permute.xlu0 %1141
        %1145 = vset.pattern.permute.xlu0 0
        %1146 = vperm.xlu0 %1145, %v1132
        %v1147 = vpop.permute.xlu0 %1146
        %1150 = vset.pattern.permute.xlu0 0
        %1151 = vperm.xlu0 %1150, %v1133
        %v1152 = vpop.permute.xlu0 %1151
        %v1155 = vsel %vm459, %v1125, 0
        %v1158 = vsel %vm459, %v1126, 0
        %v1161 = vsel %vm459, %v1127, 0
        %v1164 = vsel %vm459, %v1128, 0
        %1166 = vmatpush.msra.mxu0 0.0
        %1167 = vmatpush.msra.mxu0 0.0
        %1168 = vmatpush.msra.mxu0 0.0
        %1169 = vmatpush.msra.mxu0 0.0
        %1170 = vmatpush.msra.mxu0 0.0
        %1171 = vmatpush.msra.mxu0 0.0
        %1172 = vmatpush.msra.mxu0 0.0
        %1173 = vmatpush.msra.mxu0 0.0
        %1174 = vmatpush.msra.mxu0 0.0
        %1175 = vmatpush.msra.mxu0 0.0
        %1176 = vmatpush.msra.mxu0 0.0
        %1177 = vmatpush.msra.mxu0 0.0
        %1178 = vmatpush.msra.mxu0 %v1122
        %1179 = vmatpush.msra.mxu0 %v1120
        %1180 = vmatpush.msra.mxu0 %v1118
        %1181 = vmatpush.msra.mxu0 %v1116
        %1182 = vmatmul.f32.gmra.mxu0 %v1155
        %v1183 = vpop.f32.mrf.mxu0
        %v1184 = vadd.f32 %v1137, %v1183
        %1185 = vmatmul.f32.gmra.mxu0 %v1158
        %v1186 = vpop.f32.mrf.mxu0
        %v1187 = vadd.f32 %v1142, %v1186
        %1188 = vmatmul.f32.gmra.mxu0 %v1161
        %v1189 = vpop.f32.mrf.mxu0
        %v1190 = vadd.f32 %v1147, %v1189
        %1191 = vmatmul.f32.gmra.mxu0 %v1164
        %v1192 = vpop.f32.mrf.mxu0
        %v1193 = vadd.f32 %v1152, %v1192
        %1194 = vdwg.mxu0
        %1195 = vmatpush.msra.mxu0 0.0
        %1196 = vmatpush.msra.mxu0 0.0
        %1197 = vmatpush.msra.mxu0 0.0
        %1198 = vmatpush.msra.mxu0 0.0
        %1199 = vmatpush.msra.mxu0 0.0
        %1200 = vmatpush.msra.mxu0 0.0
        %1201 = vmatpush.msra.mxu0 0.0
        %1202 = vmatpush.msra.mxu0 0.0
        %1203 = vmatpush.msra.mxu0 0.0
        %1204 = vmatpush.msra.mxu0 0.0
        %1205 = vmatpush.msra.mxu0 0.0
        %1206 = vmatpush.msra.mxu0 0.0
        %1207 = vmatpush.msra.mxu0 %v1123
        %1208 = vmatpush.msra.mxu0 %v1121
        %1209 = vmatpush.msra.mxu0 %v1119
        %1210 = vmatpush.msra.mxu0 %v1117
        %1211 = vmatmul.f32.gmra.mxu0 %v1155
        %v1212 = vpop.f32.mrf.mxu0
        %v1213 = vadd.f32 %v1137, %v1212
        %1214 = vmatmul.f32.gmra.mxu0 %v1158
        %v1215 = vpop.f32.mrf.mxu0
        %v1216 = vadd.f32 %v1142, %v1215
        %1217 = vmatmul.f32.gmra.mxu0 %v1161
        %v1218 = vpop.f32.mrf.mxu0
        %v1219 = vadd.f32 %v1147, %v1218
        %1220 = vmatmul.f32.gmra.mxu0 %v1164
        %v1221 = vpop.f32.mrf.mxu0
        %v1222 = vadd.f32 %v1152, %v1221
        %1223 = vdwg.mxu0
        %v1224 = vadd.f32 %v834, %v1184
        %v1225 = vadd.f32 %v835, %v1213
        %v1226 = vadd.f32 %v836, %v1187
        %v1227 = vadd.f32 %v837, %v1216
        %v1228 = vadd.f32 %v838, %v1190
        %v1229 = vadd.f32 %v839, %v1219
        %v1230 = vadd.f32 %v840, %v1193
        %v1231 = vadd.f32 %v841, %v1222
        %v1232 = vsel %vm338, %v1224, 0.0
        %v1233 = vsel %vm339, %v1225, 0.0
        %v1234 = vsel %vm338, %v1226, 0.0
        %v1235 = vsel %vm339, %v1227, 0.0
        %v1236 = vsel %vm338, %v1228, 0.0
        %v1237 = vsel %vm339, %v1229, 0.0
        %v1238 = vsel %vm338, %v1230, 0.0
        %v1239 = vsel %vm339, %v1231, 0.0
        %s1240 = scalar_lea.vmem %s3, 192
        %v1241 = vld [vmem:[%s1240] sm:$0xff]
        %v1242 = vld [vmem:[%s1240 + $0x8] sm:$0xff]
        %v1243 = vld [vmem:[%s1240 + $0x10] sm:$0xff]
        %v1244 = vld [vmem:[%s1240 + $0x18] sm:$0xff]
        %v1245 = vld [vmem:[%s1240 + $0x20] sm:$0xff]
        %v1246 = vld [vmem:[%s1240 + $0x28] sm:$0xff]
        %v1247 = vld [vmem:[%s1240 + $0x30] sm:$0xff]
        %v1248 = vld [vmem:[%s1240 + $0x38] sm:$0xff]
        %v1249 = vld [vmem:[%s1240 + $0x40] sm:$0xff]
        %v1250 = vld [vmem:[%s1240 + $0x48] sm:$0xff]
        %v1251 = vld [vmem:[%s1240 + $0x50] sm:$0xff]
        %v1252 = vld [vmem:[%s1240 + $0x58] sm:$0xff]
        %v1254 = vsel %vm459, %v1241, 0
        %v1257 = vsel %vm459, %v1242, 0
        %v1260 = vsel %vm459, %v1243, 0
        %v1263 = vsel %vm459, %v1244, 0
        %v1266 = vsel %vm459, %v1245, 0
        %v1269 = vsel %vm459, %v1246, 0
        %v1272 = vsel %vm459, %v1247, 0
        %v1275 = vsel %vm459, %v1248, 0
        %v1278 = vsel %vm459, %v1249, 0
        %v1281 = vsel %vm459, %v1250, 0
        %v1284 = vsel %vm459, %v1251, 0
        %v1287 = vsel %vm459, %v1252, 0
        %1289 = vmatpush.msra.mxu0 0.0
        %1290 = vmatpush.msra.mxu0 0.0
        %1291 = vmatpush.msra.mxu0 0.0
        %1292 = vmatpush.msra.mxu0 0.0
        %1293 = vmatpush.msra.mxu0 0.0
        %1294 = vmatpush.msra.mxu0 0.0
        %1295 = vmatpush.msra.mxu0 0.0
        %1296 = vmatpush.msra.mxu0 0.0
        %1297 = vmatpush.msra.mxu0 0.0
        %1298 = vmatpush.msra.mxu0 0.0
        %1299 = vmatpush.msra.mxu0 0.0
        %1300 = vmatpush.msra.mxu0 0.0
        %1301 = vmatpush.msra.mxu0 %v1238
        %1302 = vmatpush.msra.mxu0 %v1236
        %1303 = vmatpush.msra.mxu0 %v1234
        %1304 = vmatpush.msra.mxu0 %v1232
        %1305 = vmatmul.f32.gmra.mxu0 %v1254
        %v1306 = vpop.f32.mrf.mxu0
        %v1307 = vadd.f32 0.0, %v1306
        %1308 = vmatmul.f32.gmra.mxu0 %v1257
        %v1309 = vpop.f32.mrf.mxu0
        %v1310 = vadd.f32 0.0, %v1309
        %1311 = vmatmul.f32.gmra.mxu0 %v1260
        %v1312 = vpop.f32.mrf.mxu0
        %v1313 = vadd.f32 0.0, %v1312
        %1314 = vmatmul.f32.gmra.mxu0 %v1263
        %v1315 = vpop.f32.mrf.mxu0
        %v1316 = vadd.f32 0.0, %v1315
        %1317 = vmatmul.f32.gmra.mxu0 %v1266
        %v1318 = vpop.f32.mrf.mxu0
        %v1319 = vadd.f32 0.0, %v1318
        %1320 = vmatmul.f32.gmra.mxu0 %v1269
        %v1321 = vpop.f32.mrf.mxu0
        %v1322 = vadd.f32 0.0, %v1321
        %1323 = vmatmul.f32.gmra.mxu0 %v1272
        %v1324 = vpop.f32.mrf.mxu0
        %v1325 = vadd.f32 0.0, %v1324
        %1326 = vmatmul.f32.gmra.mxu0 %v1275
        %v1327 = vpop.f32.mrf.mxu0
        %v1328 = vadd.f32 0.0, %v1327
        %1329 = vmatmul.f32.gmra.mxu0 %v1278
        %v1330 = vpop.f32.mrf.mxu0
        %v1331 = vadd.f32 0.0, %v1330
        %1332 = vmatmul.f32.gmra.mxu0 %v1281
        %v1333 = vpop.f32.mrf.mxu0
        %v1334 = vadd.f32 0.0, %v1333
        %1335 = vmatmul.f32.gmra.mxu0 %v1284
        %v1336 = vpop.f32.mrf.mxu0
        %v1337 = vadd.f32 0.0, %v1336
        %1338 = vmatmul.f32.gmra.mxu0 %v1287
        %v1339 = vpop.f32.mrf.mxu0
        %v1340 = vadd.f32 0.0, %v1339
        %1341 = vdwg.mxu0
        %1342 = vmatpush.msra.mxu0 0.0
        %1343 = vmatpush.msra.mxu0 0.0
        %1344 = vmatpush.msra.mxu0 0.0
        %1345 = vmatpush.msra.mxu0 0.0
        %1346 = vmatpush.msra.mxu0 0.0
        %1347 = vmatpush.msra.mxu0 0.0
        %1348 = vmatpush.msra.mxu0 0.0
        %1349 = vmatpush.msra.mxu0 0.0
        %1350 = vmatpush.msra.mxu0 0.0
        %1351 = vmatpush.msra.mxu0 0.0
        %1352 = vmatpush.msra.mxu0 0.0
        %1353 = vmatpush.msra.mxu0 0.0
        %1354 = vmatpush.msra.mxu0 %v1239
        %1355 = vmatpush.msra.mxu0 %v1237
        %1356 = vmatpush.msra.mxu0 %v1235
        %1357 = vmatpush.msra.mxu0 %v1233
        %1358 = vmatmul.f32.gmra.mxu0 %v1254
        %v1359 = vpop.f32.mrf.mxu0
        %v1360 = vadd.f32 0.0, %v1359
        %1361 = vmatmul.f32.gmra.mxu0 %v1257
        %v1362 = vpop.f32.mrf.mxu0
        %v1363 = vadd.f32 0.0, %v1362
        %1364 = vmatmul.f32.gmra.mxu0 %v1260
        %v1365 = vpop.f32.mrf.mxu0
        %v1366 = vadd.f32 0.0, %v1365
        %1367 = vmatmul.f32.gmra.mxu0 %v1263
        %v1368 = vpop.f32.mrf.mxu0
        %v1369 = vadd.f32 0.0, %v1368
        %1370 = vmatmul.f32.gmra.mxu0 %v1266
        %v1371 = vpop.f32.mrf.mxu0
        %v1372 = vadd.f32 0.0, %v1371
        %1373 = vmatmul.f32.gmra.mxu0 %v1269
        %v1374 = vpop.f32.mrf.mxu0
        %v1375 = vadd.f32 0.0, %v1374
        %1376 = vmatmul.f32.gmra.mxu0 %v1272
        %v1377 = vpop.f32.mrf.mxu0
        %v1378 = vadd.f32 0.0, %v1377
        %1379 = vmatmul.f32.gmra.mxu0 %v1275
        %v1380 = vpop.f32.mrf.mxu0
        %v1381 = vadd.f32 0.0, %v1380
        %1382 = vmatmul.f32.gmra.mxu0 %v1278
        %v1383 = vpop.f32.mrf.mxu0
        %v1384 = vadd.f32 0.0, %v1383
        %1385 = vmatmul.f32.gmra.mxu0 %v1281
        %v1386 = vpop.f32.mrf.mxu0
        %v1387 = vadd.f32 0.0, %v1386
        %1388 = vmatmul.f32.gmra.mxu0 %v1284
        %v1389 = vpop.f32.mrf.mxu0
        %v1390 = vadd.f32 0.0, %v1389
        %1391 = vmatmul.f32.gmra.mxu0 %v1287
        %v1392 = vpop.f32.mrf.mxu0
        %v1393 = vadd.f32 0.0, %v1392
        %1394 = vdwg.mxu0
        %1395 = vrot.lane.b32.xlu0 %v1307, 4
        %v1396 = vpop.permute.xlu0 %1395
        %1397 = vrot.lane.b32.xlu0 %v1310, 4
        %v1398 = vpop.permute.xlu0 %1397
        %1399 = vrot.lane.b32.xlu0 %v1313, 4
        %v1400 = vpop.permute.xlu0 %1399
        %1401 = vrot.lane.b32.xlu0 %v1316, 4
        %v1402 = vpop.permute.xlu0 %1401
        %1403 = vrot.lane.b32.xlu0 %v1360, 4
        %v1404 = vpop.permute.xlu0 %1403
        %1405 = vrot.lane.b32.xlu0 %v1363, 4
        %v1406 = vpop.permute.xlu0 %1405
        %1407 = vrot.lane.b32.xlu0 %v1366, 4
        %v1408 = vpop.permute.xlu0 %1407
        %1409 = vrot.lane.b32.xlu0 %v1369, 4
        %v1410 = vpop.permute.xlu0 %1409
        %vm1411 = vcmp.lt.s32.totalorder %v336, 4
        %v1412 = vsel %vm1411, %v1396, %v1404
        %v1413 = vsel %vm1411, %v1398, %v1406
        %v1414 = vsel %vm1411, %v1400, %v1408
        %v1415 = vsel %vm1411, %v1402, %v1410
        %v1416 = vsel %vm1411, %v1404, %v1396
        %v1417 = vsel %vm1411, %v1406, %v1398
        %v1418 = vsel %vm1411, %v1408, %v1400
        %v1419 = vsel %vm1411, %v1410, %v1402
        %vm1420 = vcmp.ge.s32.totalorder %v336, 4
        %vm1421 = vcmp.ge.s32.totalorder %v337, 4
        %v1422 = vsel %vm1420, %v1416, 0.0
        %v1423 = vsel %vm1421, %v1412, 0.0
        %v1424 = vsel %vm1420, %v1417, 0.0
        %v1425 = vsel %vm1421, %v1413, 0.0
        %v1426 = vsel %vm1420, %v1418, 0.0
        %v1427 = vsel %vm1421, %v1414, 0.0
        %v1428 = vsel %vm1420, %v1419, 0.0
        %v1429 = vsel %vm1421, %v1415, 0.0
        %1430 = vrot.lane.b32.xlu0 %v1331, 124
        %v1431 = vpop.permute.xlu0 %1430
        %1432 = vrot.lane.b32.xlu0 %v1334, 124
        %v1433 = vpop.permute.xlu0 %1432
        %1434 = vrot.lane.b32.xlu0 %v1337, 124
        %v1435 = vpop.permute.xlu0 %1434
        %1436 = vrot.lane.b32.xlu0 %v1340, 124
        %v1437 = vpop.permute.xlu0 %1436
        %1438 = vrot.lane.b32.xlu0 %v1384, 124
        %v1439 = vpop.permute.xlu0 %1438
        %1440 = vrot.lane.b32.xlu0 %v1387, 124
        %v1441 = vpop.permute.xlu0 %1440
        %1442 = vrot.lane.b32.xlu0 %v1390, 124
        %v1443 = vpop.permute.xlu0 %1442
        %1444 = vrot.lane.b32.xlu0 %v1393, 124
        %v1445 = vpop.permute.xlu0 %1444
        %vm1446 = vcmp.lt.s32.totalorder %v336, 124
        %v1447 = vsel %vm1446, %v1431, %v1439
        %v1448 = vsel %vm1446, %v1433, %v1441
        %v1449 = vsel %vm1446, %v1435, %v1443
        %v1450 = vsel %vm1446, %v1437, %v1445
        %v1451 = vsel %vm1446, %v1439, %v1431
        %v1452 = vsel %vm1446, %v1441, %v1433
        %v1453 = vsel %vm1446, %v1443, %v1435
        %v1454 = vsel %vm1446, %v1445, %v1437
        %vm1455 = vcmp.lt.s32.totalorder %v336, 252
        %vm1456 = vcmp.lt.s32.totalorder %v337, 252
        %v1457 = vsel %vm1455, %v1447, 0.0
        %v1458 = vsel %vm1456, %v1451, 0.0
        %v1459 = vsel %vm1455, %v1448, 0.0
        %v1460 = vsel %vm1456, %v1452, 0.0
        %v1461 = vsel %vm1455, %v1449, 0.0
        %v1462 = vsel %vm1456, %v1453, 0.0
        %v1463 = vsel %vm1455, %v1450, 0.0
        %v1464 = vsel %vm1456, %v1454, 0.0
        %v1465 = vadd.f32 %v1422, %v1319
        %v1466 = vadd.f32 %v1423, %v1372
        %v1467 = vadd.f32 %v1424, %v1322
        %v1468 = vadd.f32 %v1425, %v1375
        %v1469 = vadd.f32 %v1426, %v1325
        %v1470 = vadd.f32 %v1427, %v1378
        %v1471 = vadd.f32 %v1428, %v1328
        %v1472 = vadd.f32 %v1429, %v1381
        %v1473 = vadd.f32 %v1465, %v1457
        %v1474 = vadd.f32 %v1466, %v1458
        %v1475 = vadd.f32 %v1467, %v1459
        %v1476 = vadd.f32 %v1468, %v1460
        %v1477 = vadd.f32 %v1469, %v1461
        %v1478 = vadd.f32 %v1470, %v1462
        %v1479 = vadd.f32 %v1471, %v1463
        %v1480 = vadd.f32 %v1472, %v1464
        %s1481 = scalar_lea.vmem %s4, 64
        %v1482 = vld [vmem:[%s1481] sm:$0xff]
        %v1483 = vld [vmem:[%s1481 + $0x8] sm:$0xff]
        %v1484 = vld [vmem:[%s1481 + $0x10] sm:$0xff]
        %v1485 = vld [vmem:[%s1481 + $0x18] sm:$0xff]
        %1487 = vset.pattern.permute.xlu0 0
        %1488 = vperm.xlu0 %1487, %v1482
        %v1489 = vpop.permute.xlu0 %1488
        %1492 = vset.pattern.permute.xlu0 0
        %1493 = vperm.xlu0 %1492, %v1483
        %v1494 = vpop.permute.xlu0 %1493
        %1497 = vset.pattern.permute.xlu0 0
        %1498 = vperm.xlu0 %1497, %v1484
        %v1499 = vpop.permute.xlu0 %1498
        %1502 = vset.pattern.permute.xlu0 0
        %1503 = vperm.xlu0 %1502, %v1485
        %v1504 = vpop.permute.xlu0 %1503
        %v1506 = vadd.f32 %v1473, %v1489
        %v1507 = vadd.f32 %v1474, %v1489
        %v1508 = vadd.f32 %v1475, %v1494
        %v1509 = vadd.f32 %v1476, %v1494
        %v1510 = vadd.f32 %v1477, %v1499
        %v1511 = vadd.f32 %v1478, %v1499
        %v1512 = vadd.f32 %v1479, %v1504
        %v1513 = vadd.f32 %v1480, %v1504
        %v1514 = vmax.f32 %v1506, 0.0
        %v1515 = vmax.f32 %v1507, 0.0
        %v1516 = vmax.f32 %v1508, 0.0
        %v1517 = vmax.f32 %v1509, 0.0
        %v1518 = vmax.f32 %v1510, 0.0
        %v1519 = vmax.f32 %v1511, 0.0
        %v1520 = vmax.f32 %v1512, 0.0
        %v1521 = vmax.f32 %v1513, 0.0
        %s1522 = scalar_lea.vmem %s5, 64
        %v1523 = vld [vmem:[%s1522] sm:$0xff]
        %v1524 = vld [vmem:[%s1522 + $0x8] sm:$0xff]
        %v1525 = vld [vmem:[%s1522 + $0x10] sm:$0xff]
        %v1526 = vld [vmem:[%s1522 + $0x18] sm:$0xff]
        %s1527 = scalar_lea.vmem %s6, 64
        %v1528 = vld [vmem:[%s1527] sm:$0xff]
        %v1529 = vld [vmem:[%s1527 + $0x8] sm:$0xff]
        %v1530 = vld [vmem:[%s1527 + $0x10] sm:$0xff]
        %v1531 = vld [vmem:[%s1527 + $0x18] sm:$0xff]
        %1533 = vset.pattern.permute.xlu0 0
        %1534 = vperm.xlu0 %1533, %v1528
        %v1535 = vpop.permute.xlu0 %1534
        %1538 = vset.pattern.permute.xlu0 0
        %1539 = vperm.xlu0 %1538, %v1529
        %v1540 = vpop.permute.xlu0 %1539
        %1543 = vset.pattern.permute.xlu0 0
        %1544 = vperm.xlu0 %1543, %v1530
        %v1545 = vpop.permute.xlu0 %1544
        %1548 = vset.pattern.permute.xlu0 0
        %1549 = vperm.xlu0 %1548, %v1531
        %v1550 = vpop.permute.xlu0 %1549
        %v1553 = vsel %vm459, %v1523, 0
        %v1556 = vsel %vm459, %v1524, 0
        %v1559 = vsel %vm459, %v1525, 0
        %v1562 = vsel %vm459, %v1526, 0
        %1564 = vmatpush.msra.mxu0 0.0
        %1565 = vmatpush.msra.mxu0 0.0
        %1566 = vmatpush.msra.mxu0 0.0
        %1567 = vmatpush.msra.mxu0 0.0
        %1568 = vmatpush.msra.mxu0 0.0
        %1569 = vmatpush.msra.mxu0 0.0
        %1570 = vmatpush.msra.mxu0 0.0
        %1571 = vmatpush.msra.mxu0 0.0
        %1572 = vmatpush.msra.mxu0 0.0
        %1573 = vmatpush.msra.mxu0 0.0
        %1574 = vmatpush.msra.mxu0 0.0
        %1575 = vmatpush.msra.mxu0 0.0
        %1576 = vmatpush.msra.mxu0 %v1520
        %1577 = vmatpush.msra.mxu0 %v1518
        %1578 = vmatpush.msra.mxu0 %v1516
        %1579 = vmatpush.msra.mxu0 %v1514
        %1580 = vmatmul.f32.gmra.mxu0 %v1553
        %v1581 = vpop.f32.mrf.mxu0
        %v1582 = vadd.f32 %v1535, %v1581
        %1583 = vmatmul.f32.gmra.mxu0 %v1556
        %v1584 = vpop.f32.mrf.mxu0
        %v1585 = vadd.f32 %v1540, %v1584
        %1586 = vmatmul.f32.gmra.mxu0 %v1559
        %v1587 = vpop.f32.mrf.mxu0
        %v1588 = vadd.f32 %v1545, %v1587
        %1589 = vmatmul.f32.gmra.mxu0 %v1562
        %v1590 = vpop.f32.mrf.mxu0
        %v1591 = vadd.f32 %v1550, %v1590
        %1592 = vdwg.mxu0
        %1593 = vmatpush.msra.mxu0 0.0
        %1594 = vmatpush.msra.mxu0 0.0
        %1595 = vmatpush.msra.mxu0 0.0
        %1596 = vmatpush.msra.mxu0 0.0
        %1597 = vmatpush.msra.mxu0 0.0
        %1598 = vmatpush.msra.mxu0 0.0
        %1599 = vmatpush.msra.mxu0 0.0
        %1600 = vmatpush.msra.mxu0 0.0
        %1601 = vmatpush.msra.mxu0 0.0
        %1602 = vmatpush.msra.mxu0 0.0
        %1603 = vmatpush.msra.mxu0 0.0
        %1604 = vmatpush.msra.mxu0 0.0
        %1605 = vmatpush.msra.mxu0 %v1521
        %1606 = vmatpush.msra.mxu0 %v1519
        %1607 = vmatpush.msra.mxu0 %v1517
        %1608 = vmatpush.msra.mxu0 %v1515
        %1609 = vmatmul.f32.gmra.mxu0 %v1553
        %v1610 = vpop.f32.mrf.mxu0
        %v1611 = vadd.f32 %v1535, %v1610
        %1612 = vmatmul.f32.gmra.mxu0 %v1556
        %v1613 = vpop.f32.mrf.mxu0
        %v1614 = vadd.f32 %v1540, %v1613
        %1615 = vmatmul.f32.gmra.mxu0 %v1559
        %v1616 = vpop.f32.mrf.mxu0
        %v1617 = vadd.f32 %v1545, %v1616
        %1618 = vmatmul.f32.gmra.mxu0 %v1562
        %v1619 = vpop.f32.mrf.mxu0
        %v1620 = vadd.f32 %v1550, %v1619
        %1621 = vdwg.mxu0
        %v1622 = vadd.f32 %v1232, %v1582
        %v1623 = vadd.f32 %v1233, %v1611
        %v1624 = vadd.f32 %v1234, %v1585
        %v1625 = vadd.f32 %v1235, %v1614
        %v1626 = vadd.f32 %v1236, %v1588
        %v1627 = vadd.f32 %v1237, %v1617
        %v1628 = vadd.f32 %v1238, %v1591
        %v1629 = vadd.f32 %v1239, %v1620
        %v1630 = vsel %vm338, %v1622, 0.0
        %v1631 = vsel %vm339, %v1623, 0.0
        %v1632 = vsel %vm338, %v1624, 0.0
        %v1633 = vsel %vm339, %v1625, 0.0
        %v1634 = vsel %vm338, %v1626, 0.0
        %v1635 = vsel %vm339, %v1627, 0.0
        %v1636 = vsel %vm338, %v1628, 0.0
        %v1637 = vsel %vm339, %v1629, 0.0
        %s1638 = scalar_lea.vmem %s3, 288
        %v1639 = vld [vmem:[%s1638] sm:$0xff]
        %v1640 = vld [vmem:[%s1638 + $0x8] sm:$0xff]
        %v1641 = vld [vmem:[%s1638 + $0x10] sm:$0xff]
        %v1642 = vld [vmem:[%s1638 + $0x18] sm:$0xff]
        %v1643 = vld [vmem:[%s1638 + $0x20] sm:$0xff]
        %v1644 = vld [vmem:[%s1638 + $0x28] sm:$0xff]
        %v1645 = vld [vmem:[%s1638 + $0x30] sm:$0xff]
        %v1646 = vld [vmem:[%s1638 + $0x38] sm:$0xff]
        %v1647 = vld [vmem:[%s1638 + $0x40] sm:$0xff]
        %v1648 = vld [vmem:[%s1638 + $0x48] sm:$0xff]
        %v1649 = vld [vmem:[%s1638 + $0x50] sm:$0xff]
        %v1650 = vld [vmem:[%s1638 + $0x58] sm:$0xff]
        %v1652 = vsel %vm459, %v1639, 0
        %v1655 = vsel %vm459, %v1640, 0
        %v1658 = vsel %vm459, %v1641, 0
        %v1661 = vsel %vm459, %v1642, 0
        %v1664 = vsel %vm459, %v1643, 0
        %v1667 = vsel %vm459, %v1644, 0
        %v1670 = vsel %vm459, %v1645, 0
        %v1673 = vsel %vm459, %v1646, 0
        %v1676 = vsel %vm459, %v1647, 0
        %v1679 = vsel %vm459, %v1648, 0
        %v1682 = vsel %vm459, %v1649, 0
        %v1685 = vsel %vm459, %v1650, 0
        %1687 = vmatpush.msra.mxu0 0.0
        %1688 = vmatpush.msra.mxu0 0.0
        %1689 = vmatpush.msra.mxu0 0.0
        %1690 = vmatpush.msra.mxu0 0.0
        %1691 = vmatpush.msra.mxu0 0.0
        %1692 = vmatpush.msra.mxu0 0.0
        %1693 = vmatpush.msra.mxu0 0.0
        %1694 = vmatpush.msra.mxu0 0.0
        %1695 = vmatpush.msra.mxu0 0.0
        %1696 = vmatpush.msra.mxu0 0.0
        %1697 = vmatpush.msra.mxu0 0.0
        %1698 = vmatpush.msra.mxu0 0.0
        %1699 = vmatpush.msra.mxu0 %v1636
        %1700 = vmatpush.msra.mxu0 %v1634
        %1701 = vmatpush.msra.mxu0 %v1632
        %1702 = vmatpush.msra.mxu0 %v1630
        %1703 = vmatmul.f32.gmra.mxu0 %v1652
        %v1704 = vpop.f32.mrf.mxu0
        %v1705 = vadd.f32 0.0, %v1704
        %1706 = vmatmul.f32.gmra.mxu0 %v1655
        %v1707 = vpop.f32.mrf.mxu0
        %v1708 = vadd.f32 0.0, %v1707
        %1709 = vmatmul.f32.gmra.mxu0 %v1658
        %v1710 = vpop.f32.mrf.mxu0
        %v1711 = vadd.f32 0.0, %v1710
        %1712 = vmatmul.f32.gmra.mxu0 %v1661
        %v1713 = vpop.f32.mrf.mxu0
        %v1714 = vadd.f32 0.0, %v1713
        %1715 = vmatmul.f32.gmra.mxu0 %v1664
        %v1716 = vpop.f32.mrf.mxu0
        %v1717 = vadd.f32 0.0, %v1716
        %1718 = vmatmul.f32.gmra.mxu0 %v1667
        %v1719 = vpop.f32.mrf.mxu0
        %v1720 = vadd.f32 0.0, %v1719
        %1721 = vmatmul.f32.gmra.mxu0 %v1670
        %v1722 = vpop.f32.mrf.mxu0
        %v1723 = vadd.f32 0.0, %v1722
        %1724 = vmatmul.f32.gmra.mxu0 %v1673
        %v1725 = vpop.f32.mrf.mxu0
        %v1726 = vadd.f32 0.0, %v1725
        %1727 = vmatmul.f32.gmra.mxu0 %v1676
        %v1728 = vpop.f32.mrf.mxu0
        %v1729 = vadd.f32 0.0, %v1728
        %1730 = vmatmul.f32.gmra.mxu0 %v1679
        %v1731 = vpop.f32.mrf.mxu0
        %v1732 = vadd.f32 0.0, %v1731
        %1733 = vmatmul.f32.gmra.mxu0 %v1682
        %v1734 = vpop.f32.mrf.mxu0
        %v1735 = vadd.f32 0.0, %v1734
        %1736 = vmatmul.f32.gmra.mxu0 %v1685
        %v1737 = vpop.f32.mrf.mxu0
        %v1738 = vadd.f32 0.0, %v1737
        %1739 = vdwg.mxu0
        %1740 = vmatpush.msra.mxu0 0.0
        %1741 = vmatpush.msra.mxu0 0.0
        %1742 = vmatpush.msra.mxu0 0.0
        %1743 = vmatpush.msra.mxu0 0.0
        %1744 = vmatpush.msra.mxu0 0.0
        %1745 = vmatpush.msra.mxu0 0.0
        %1746 = vmatpush.msra.mxu0 0.0
        %1747 = vmatpush.msra.mxu0 0.0
        %1748 = vmatpush.msra.mxu0 0.0
        %1749 = vmatpush.msra.mxu0 0.0
        %1750 = vmatpush.msra.mxu0 0.0
        %1751 = vmatpush.msra.mxu0 0.0
        %1752 = vmatpush.msra.mxu0 %v1637
        %1753 = vmatpush.msra.mxu0 %v1635
        %1754 = vmatpush.msra.mxu0 %v1633
        %1755 = vmatpush.msra.mxu0 %v1631
        %1756 = vmatmul.f32.gmra.mxu0 %v1652
        %v1757 = vpop.f32.mrf.mxu0
        %v1758 = vadd.f32 0.0, %v1757
        %1759 = vmatmul.f32.gmra.mxu0 %v1655
        %v1760 = vpop.f32.mrf.mxu0
        %v1761 = vadd.f32 0.0, %v1760
        %1762 = vmatmul.f32.gmra.mxu0 %v1658
        %v1763 = vpop.f32.mrf.mxu0
        %v1764 = vadd.f32 0.0, %v1763
        %1765 = vmatmul.f32.gmra.mxu0 %v1661
        %v1766 = vpop.f32.mrf.mxu0
        %v1767 = vadd.f32 0.0, %v1766
        %1768 = vmatmul.f32.gmra.mxu0 %v1664
        %v1769 = vpop.f32.mrf.mxu0
        %v1770 = vadd.f32 0.0, %v1769
        %1771 = vmatmul.f32.gmra.mxu0 %v1667
        %v1772 = vpop.f32.mrf.mxu0
        %v1773 = vadd.f32 0.0, %v1772
        %1774 = vmatmul.f32.gmra.mxu0 %v1670
        %v1775 = vpop.f32.mrf.mxu0
        %v1776 = vadd.f32 0.0, %v1775
        %1777 = vmatmul.f32.gmra.mxu0 %v1673
        %v1778 = vpop.f32.mrf.mxu0
        %v1779 = vadd.f32 0.0, %v1778
        %1780 = vmatmul.f32.gmra.mxu0 %v1676
        %v1781 = vpop.f32.mrf.mxu0
        %v1782 = vadd.f32 0.0, %v1781
        %1783 = vmatmul.f32.gmra.mxu0 %v1679
        %v1784 = vpop.f32.mrf.mxu0
        %v1785 = vadd.f32 0.0, %v1784
        %1786 = vmatmul.f32.gmra.mxu0 %v1682
        %v1787 = vpop.f32.mrf.mxu0
        %v1788 = vadd.f32 0.0, %v1787
        %1789 = vmatmul.f32.gmra.mxu0 %v1685
        %v1790 = vpop.f32.mrf.mxu0
        %v1791 = vadd.f32 0.0, %v1790
        %1792 = vdwg.mxu0
        %1793 = vrot.lane.b32.xlu0 %v1705, 8
        %v1794 = vpop.permute.xlu0 %1793
        %1795 = vrot.lane.b32.xlu0 %v1708, 8
        %v1796 = vpop.permute.xlu0 %1795
        %1797 = vrot.lane.b32.xlu0 %v1711, 8
        %v1798 = vpop.permute.xlu0 %1797
        %1799 = vrot.lane.b32.xlu0 %v1714, 8
        %v1800 = vpop.permute.xlu0 %1799
        %1801 = vrot.lane.b32.xlu0 %v1758, 8
        %v1802 = vpop.permute.xlu0 %1801
        %1803 = vrot.lane.b32.xlu0 %v1761, 8
        %v1804 = vpop.permute.xlu0 %1803
        %1805 = vrot.lane.b32.xlu0 %v1764, 8
        %v1806 = vpop.permute.xlu0 %1805
        %1807 = vrot.lane.b32.xlu0 %v1767, 8
        %v1808 = vpop.permute.xlu0 %1807
        %vm1809 = vcmp.lt.s32.totalorder %v336, 8
        %v1810 = vsel %vm1809, %v1794, %v1802
        %v1811 = vsel %vm1809, %v1796, %v1804
        %v1812 = vsel %vm1809, %v1798, %v1806
        %v1813 = vsel %vm1809, %v1800, %v1808
        %v1814 = vsel %vm1809, %v1802, %v1794
        %v1815 = vsel %vm1809, %v1804, %v1796
        %v1816 = vsel %vm1809, %v1806, %v1798
        %v1817 = vsel %vm1809, %v1808, %v1800
        %vm1818 = vcmp.ge.s32.totalorder %v336, 8
        %vm1819 = vcmp.ge.s32.totalorder %v337, 8
        %v1820 = vsel %vm1818, %v1814, 0.0
        %v1821 = vsel %vm1819, %v1810, 0.0
        %v1822 = vsel %vm1818, %v1815, 0.0
        %v1823 = vsel %vm1819, %v1811, 0.0
        %v1824 = vsel %vm1818, %v1816, 0.0
        %v1825 = vsel %vm1819, %v1812, 0.0
        %v1826 = vsel %vm1818, %v1817, 0.0
        %v1827 = vsel %vm1819, %v1813, 0.0
        %1828 = vrot.lane.b32.xlu0 %v1729, 120
        %v1829 = vpop.permute.xlu0 %1828
        %1830 = vrot.lane.b32.xlu0 %v1732, 120
        %v1831 = vpop.permute.xlu0 %1830
        %1832 = vrot.lane.b32.xlu0 %v1735, 120
        %v1833 = vpop.permute.xlu0 %1832
        %1834 = vrot.lane.b32.xlu0 %v1738, 120
        %v1835 = vpop.permute.xlu0 %1834
        %1836 = vrot.lane.b32.xlu0 %v1782, 120
        %v1837 = vpop.permute.xlu0 %1836
        %1838 = vrot.lane.b32.xlu0 %v1785, 120
        %v1839 = vpop.permute.xlu0 %1838
        %1840 = vrot.lane.b32.xlu0 %v1788, 120
        %v1841 = vpop.permute.xlu0 %1840
        %1842 = vrot.lane.b32.xlu0 %v1791, 120
        %v1843 = vpop.permute.xlu0 %1842
        %vm1844 = vcmp.lt.s32.totalorder %v336, 120
        %v1845 = vsel %vm1844, %v1829, %v1837
        %v1846 = vsel %vm1844, %v1831, %v1839
        %v1847 = vsel %vm1844, %v1833, %v1841
        %v1848 = vsel %vm1844, %v1835, %v1843
        %v1849 = vsel %vm1844, %v1837, %v1829
        %v1850 = vsel %vm1844, %v1839, %v1831
        %v1851 = vsel %vm1844, %v1841, %v1833
        %v1852 = vsel %vm1844, %v1843, %v1835
        %vm1853 = vcmp.lt.s32.totalorder %v336, 248
        %vm1854 = vcmp.lt.s32.totalorder %v337, 248
        %v1855 = vsel %vm1853, %v1845, 0.0
        %v1856 = vsel %vm1854, %v1849, 0.0
        %v1857 = vsel %vm1853, %v1846, 0.0
        %v1858 = vsel %vm1854, %v1850, 0.0
        %v1859 = vsel %vm1853, %v1847, 0.0
        %v1860 = vsel %vm1854, %v1851, 0.0
        %v1861 = vsel %vm1853, %v1848, 0.0
        %v1862 = vsel %vm1854, %v1852, 0.0
        %v1863 = vadd.f32 %v1820, %v1717
        %v1864 = vadd.f32 %v1821, %v1770
        %v1865 = vadd.f32 %v1822, %v1720
        %v1866 = vadd.f32 %v1823, %v1773
        %v1867 = vadd.f32 %v1824, %v1723
        %v1868 = vadd.f32 %v1825, %v1776
        %v1869 = vadd.f32 %v1826, %v1726
        %v1870 = vadd.f32 %v1827, %v1779
        %v1871 = vadd.f32 %v1863, %v1855
        %v1872 = vadd.f32 %v1864, %v1856
        %v1873 = vadd.f32 %v1865, %v1857
        %v1874 = vadd.f32 %v1866, %v1858
        %v1875 = vadd.f32 %v1867, %v1859
        %v1876 = vadd.f32 %v1868, %v1860
        %v1877 = vadd.f32 %v1869, %v1861
        %v1878 = vadd.f32 %v1870, %v1862
        %s1879 = scalar_lea.vmem %s4, 96
        %v1880 = vld [vmem:[%s1879] sm:$0xff]
        %v1881 = vld [vmem:[%s1879 + $0x8] sm:$0xff]
        %v1882 = vld [vmem:[%s1879 + $0x10] sm:$0xff]
        %v1883 = vld [vmem:[%s1879 + $0x18] sm:$0xff]
        %1885 = vset.pattern.permute.xlu0 0
        %1886 = vperm.xlu0 %1885, %v1880
        %v1887 = vpop.permute.xlu0 %1886
        %1890 = vset.pattern.permute.xlu0 0
        %1891 = vperm.xlu0 %1890, %v1881
        %v1892 = vpop.permute.xlu0 %1891
        %1895 = vset.pattern.permute.xlu0 0
        %1896 = vperm.xlu0 %1895, %v1882
        %v1897 = vpop.permute.xlu0 %1896
        %1900 = vset.pattern.permute.xlu0 0
        %1901 = vperm.xlu0 %1900, %v1883
        %v1902 = vpop.permute.xlu0 %1901
        %v1904 = vadd.f32 %v1871, %v1887
        %v1905 = vadd.f32 %v1872, %v1887
        %v1906 = vadd.f32 %v1873, %v1892
        %v1907 = vadd.f32 %v1874, %v1892
        %v1908 = vadd.f32 %v1875, %v1897
        %v1909 = vadd.f32 %v1876, %v1897
        %v1910 = vadd.f32 %v1877, %v1902
        %v1911 = vadd.f32 %v1878, %v1902
        %v1912 = vmax.f32 %v1904, 0.0
        %v1913 = vmax.f32 %v1905, 0.0
        %v1914 = vmax.f32 %v1906, 0.0
        %v1915 = vmax.f32 %v1907, 0.0
        %v1916 = vmax.f32 %v1908, 0.0
        %v1917 = vmax.f32 %v1909, 0.0
        %v1918 = vmax.f32 %v1910, 0.0
        %v1919 = vmax.f32 %v1911, 0.0
        %s1920 = scalar_lea.vmem %s5, 96
        %v1921 = vld [vmem:[%s1920] sm:$0xff]
        %v1922 = vld [vmem:[%s1920 + $0x8] sm:$0xff]
        %v1923 = vld [vmem:[%s1920 + $0x10] sm:$0xff]
        %v1924 = vld [vmem:[%s1920 + $0x18] sm:$0xff]
        %s1925 = scalar_lea.vmem %s6, 96
        %v1926 = vld [vmem:[%s1925] sm:$0xff]
        %v1927 = vld [vmem:[%s1925 + $0x8] sm:$0xff]
        %v1928 = vld [vmem:[%s1925 + $0x10] sm:$0xff]
        %v1929 = vld [vmem:[%s1925 + $0x18] sm:$0xff]
        %1931 = vset.pattern.permute.xlu0 0
        %1932 = vperm.xlu0 %1931, %v1926
        %v1933 = vpop.permute.xlu0 %1932
        %1936 = vset.pattern.permute.xlu0 0
        %1937 = vperm.xlu0 %1936, %v1927
        %v1938 = vpop.permute.xlu0 %1937
        %1941 = vset.pattern.permute.xlu0 0
        %1942 = vperm.xlu0 %1941, %v1928
        %v1943 = vpop.permute.xlu0 %1942
        %1946 = vset.pattern.permute.xlu0 0
        %1947 = vperm.xlu0 %1946, %v1929
        %v1948 = vpop.permute.xlu0 %1947
        %v1951 = vsel %vm459, %v1921, 0
        %v1954 = vsel %vm459, %v1922, 0
        %v1957 = vsel %vm459, %v1923, 0
        %v1960 = vsel %vm459, %v1924, 0
        %1962 = vmatpush.msra.mxu0 0.0
        %1963 = vmatpush.msra.mxu0 0.0
        %1964 = vmatpush.msra.mxu0 0.0
        %1965 = vmatpush.msra.mxu0 0.0
        %1966 = vmatpush.msra.mxu0 0.0
        %1967 = vmatpush.msra.mxu0 0.0
        %1968 = vmatpush.msra.mxu0 0.0
        %1969 = vmatpush.msra.mxu0 0.0
        %1970 = vmatpush.msra.mxu0 0.0
        %1971 = vmatpush.msra.mxu0 0.0
        %1972 = vmatpush.msra.mxu0 0.0
        %1973 = vmatpush.msra.mxu0 0.0
        %1974 = vmatpush.msra.mxu0 %v1918
        %1975 = vmatpush.msra.mxu0 %v1916
        %1976 = vmatpush.msra.mxu0 %v1914
        %1977 = vmatpush.msra.mxu0 %v1912
        %1978 = vmatmul.f32.gmra.mxu0 %v1951
        %v1979 = vpop.f32.mrf.mxu0
        %v1980 = vadd.f32 %v1933, %v1979
        %1981 = vmatmul.f32.gmra.mxu0 %v1954
        %v1982 = vpop.f32.mrf.mxu0
        %v1983 = vadd.f32 %v1938, %v1982
        %1984 = vmatmul.f32.gmra.mxu0 %v1957
        %v1985 = vpop.f32.mrf.mxu0
        %v1986 = vadd.f32 %v1943, %v1985
        %1987 = vmatmul.f32.gmra.mxu0 %v1960
        %v1988 = vpop.f32.mrf.mxu0
        %v1989 = vadd.f32 %v1948, %v1988
        %1990 = vdwg.mxu0
        %1991 = vmatpush.msra.mxu0 0.0
        %1992 = vmatpush.msra.mxu0 0.0
        %1993 = vmatpush.msra.mxu0 0.0
        %1994 = vmatpush.msra.mxu0 0.0
        %1995 = vmatpush.msra.mxu0 0.0
        %1996 = vmatpush.msra.mxu0 0.0
        %1997 = vmatpush.msra.mxu0 0.0
        %1998 = vmatpush.msra.mxu0 0.0
        %1999 = vmatpush.msra.mxu0 0.0
        %2000 = vmatpush.msra.mxu0 0.0
        %2001 = vmatpush.msra.mxu0 0.0
        %2002 = vmatpush.msra.mxu0 0.0
        %2003 = vmatpush.msra.mxu0 %v1919
        %2004 = vmatpush.msra.mxu0 %v1917
        %2005 = vmatpush.msra.mxu0 %v1915
        %2006 = vmatpush.msra.mxu0 %v1913
        %2007 = vmatmul.f32.gmra.mxu0 %v1951
        %v2008 = vpop.f32.mrf.mxu0
        %v2009 = vadd.f32 %v1933, %v2008
        %2010 = vmatmul.f32.gmra.mxu0 %v1954
        %v2011 = vpop.f32.mrf.mxu0
        %v2012 = vadd.f32 %v1938, %v2011
        %2013 = vmatmul.f32.gmra.mxu0 %v1957
        %v2014 = vpop.f32.mrf.mxu0
        %v2015 = vadd.f32 %v1943, %v2014
        %2016 = vmatmul.f32.gmra.mxu0 %v1960
        %v2017 = vpop.f32.mrf.mxu0
        %v2018 = vadd.f32 %v1948, %v2017
        %2019 = vdwg.mxu0
        %v2020 = vadd.f32 %v1630, %v1980
        %v2021 = vadd.f32 %v1631, %v2009
        %v2022 = vadd.f32 %v1632, %v1983
        %v2023 = vadd.f32 %v1633, %v2012
        %v2024 = vadd.f32 %v1634, %v1986
        %v2025 = vadd.f32 %v1635, %v2015
        %v2026 = vadd.f32 %v1636, %v1989
        %v2027 = vadd.f32 %v1637, %v2018
        %v2028 = vsel %vm338, %v2020, 0.0
        %v2029 = vsel %vm339, %v2021, 0.0
        %v2030 = vsel %vm338, %v2022, 0.0
        %v2031 = vsel %vm339, %v2023, 0.0
        %v2032 = vsel %vm338, %v2024, 0.0
        %v2033 = vsel %vm339, %v2025, 0.0
        %v2034 = vsel %vm338, %v2026, 0.0
        %v2035 = vsel %vm339, %v2027, 0.0
        %v2036 = vld [vmem:[%s7] sm:$0xff]
        %v2037 = vld [vmem:[%s7 + $0x8] sm:$0xff]
        %v2038 = vld [vmem:[%s8] sm:$0xff]
        %v2039 = vld [vmem:[%s8 + $0x8] sm:$0xff]
        %2041 = vset.pattern.permute.xlu0 0
        %2042 = vperm.xlu0 %2041, %v2038
        %v2043 = vpop.permute.xlu0 %2042
        %2046 = vset.pattern.permute.xlu0 0
        %2047 = vperm.xlu0 %2046, %v2039
        %v2048 = vpop.permute.xlu0 %2047
        %v2051 = vsel %vm459, %v2036, 0
        %v2054 = vsel %vm459, %v2037, 0
        %2056 = vmatpush.msra.mxu0 0.0
        %2057 = vmatpush.msra.mxu0 0.0
        %2058 = vmatpush.msra.mxu0 0.0
        %2059 = vmatpush.msra.mxu0 0.0
        %2060 = vmatpush.msra.mxu0 0.0
        %2061 = vmatpush.msra.mxu0 0.0
        %2062 = vmatpush.msra.mxu0 0.0
        %2063 = vmatpush.msra.mxu0 0.0
        %2064 = vmatpush.msra.mxu0 0.0
        %2065 = vmatpush.msra.mxu0 0.0
        %2066 = vmatpush.msra.mxu0 0.0
        %2067 = vmatpush.msra.mxu0 0.0
        %2068 = vmatpush.msra.mxu0 %v2034
        %2069 = vmatpush.msra.mxu0 %v2032
        %2070 = vmatpush.msra.mxu0 %v2030
        %2071 = vmatpush.msra.mxu0 %v2028
        %2072 = vmatmul.f32.gmra.mxu0 %v2051
        %v2073 = vpop.f32.mrf.mxu0
        %v2074 = vadd.f32 %v2043, %v2073
        %2075 = vmatmul.f32.gmra.mxu0 %v2054
        %v2076 = vpop.f32.mrf.mxu0
        %v2077 = vadd.f32 %v2048, %v2076
        %2078 = vdwg.mxu0
        %2079 = vmatpush.msra.mxu0 0.0
        %2080 = vmatpush.msra.mxu0 0.0
        %2081 = vmatpush.msra.mxu0 0.0
        %2082 = vmatpush.msra.mxu0 0.0
        %2083 = vmatpush.msra.mxu0 0.0
        %2084 = vmatpush.msra.mxu0 0.0
        %2085 = vmatpush.msra.mxu0 0.0
        %2086 = vmatpush.msra.mxu0 0.0
        %2087 = vmatpush.msra.mxu0 0.0
        %2088 = vmatpush.msra.mxu0 0.0
        %2089 = vmatpush.msra.mxu0 0.0
        %2090 = vmatpush.msra.mxu0 0.0
        %2091 = vmatpush.msra.mxu0 %v2035
        %2092 = vmatpush.msra.mxu0 %v2033
        %2093 = vmatpush.msra.mxu0 %v2031
        %2094 = vmatpush.msra.mxu0 %v2029
        %2095 = vmatmul.f32.gmra.mxu0 %v2051
        %v2096 = vpop.f32.mrf.mxu0
        %v2097 = vadd.f32 %v2043, %v2096
        %2098 = vmatmul.f32.gmra.mxu0 %v2054
        %v2099 = vpop.f32.mrf.mxu0
        %v2100 = vadd.f32 %v2048, %v2099
        %2101 = vdwg.mxu0
        %2102 = vst [vmem:[%s325] sm:$0xff] %v2074
        %2103 = vst [vmem:[%s325 + $0x8] sm:$0xff] %v2097
        %2104 = vst [vmem:[%s325 + $0x10] sm:$0xff] %v2077
        %2105 = vst [vmem:[%s325 + $0x18] sm:$0xff] %v2100
        %s2106 = sand.u32 %s225, 1
        %s2107 = scalar_lea.sflag [#allocation3], %s2106
        %s2108 = sand.u32 %s225, 1
        %s2109 = smul.addr %s2108, 32
        %s2110 = scalar_lea.vmem [#allocation2], %s2109
        // Predicated region
        $region57: #{tpu_custom_call.1} parent=55 // pred_check
          %p2111 = pneg %p235
        $region58: #{tpu_custom_call.1} parent=55 // pred_check_branch
          %2113 = sbr.rel (%p2111) target = $region60
        $region59: #{tpu_custom_call.1} parent=55 // pred_region
          %2115 = vsyncadd %s2107, 0
          %s2116 = smul.addr %s23, 4
          %s2117 = smul.addr %s2116, 8
          %s2118 = scalar_lea.hbm %s9, %s2117
          %s2119 = sshll.u32 %s2110, 4
          %s2120 = int_to_ptr.vmem [resolvable:$true] %s2119
          %s2121 = sshll.u32 %s2118, 4
          %s2122 = int_to_ptr.hbm [resolvable:$true] %s2121
          %2127 = dma.vmem_to_hbm [thread:$0]  %s2120, 512, %s2122, %s2107, 256, 256, 16
        $region60: #{tpu_custom_call.1} parent=55 // pred_fallthru
          _
      $region56: #{tpu_custom_call.1} parent=5 // pred_fallthru
        _
      %p2128 = scmp.le.s32.totalorder 2, %s18
      // Predicated region
      $region61: #{tpu_custom_call.1} parent=5 // pred_check
        %p2129 = pneg %p2128
      $region62: #{tpu_custom_call.1} parent=5 // pred_check_branch
        %2131 = sbr.rel (%p2129) target = $region64
      $region63: #{tpu_custom_call.1} parent=5 // pred_region
        %s2132 = ssub.s32 %s18, 2
        // Predicated region
        $region65: #{tpu_custom_call.1} parent=63 // pred_check
          %p2133 = pneg %p241
        $region66: #{tpu_custom_call.1} parent=63 // pred_check_branch
          %2135 = sbr.rel (%p2133) target = $region68
        $region67: #{tpu_custom_call.1} parent=63 // pred_region
          %s2136 = sand.u32 %s226, 1
          %s2137 = scalar_lea.sflag [#allocation3], %s2136
          %s2138 = sand.u32 %s226, 1
          %s2139 = smul.addr %s2138, 32
          %s2140 = scalar_lea.vmem [#allocation2], %s2139
          %2142 = dma.done %s2137, 512
        $region68: #{tpu_custom_call.1} parent=63 // pred_fallthru
          _
      $region64: #{tpu_custom_call.1} parent=5 // pred_fallthru
        _
    $region6: #{tpu_custom_call.1} parent=1 // loop_footer
      %s22 = sadd.s32 1, %s18
    $region7: #{tpu_custom_call.1} parent=1 // loop_footer_branch
      %17 = sbr.rel target = $region3
    $region8: #{tpu_custom_call.1} parent=1 // loop_exit
      _
    %2143 = vsyncpa [#allocation3], 1
    %s2144 = scalar_lea.sflag [#allocation3], 1
    %2145 = vsyncpa %s2144, 1

</llo_original>
